<compile_context>
chip_gen: v5e
topology: v5e:2x2
jax: 0.10.0
libtpu: 0.0.40
codegen_flags: <defaults>
</compile_context>

<pallas_src>
import functools

import jax
import jax.numpy as jnp
from jax.experimental import pallas as pl
from jax.experimental.pallas import tpu as pltpu

ACT_DTYPE = jnp.bfloat16          # activation / matmul-operand dtype
_VMEM_LIMIT = 40 * 1024 * 1024    # scoped VMEM limit (v7x-safe)


# ---------------------------------------------------------------------------
# Pallas kernels
# ---------------------------------------------------------------------------

def _pw_kernel(x_ref, w_ref, b_ref, o_ref, *, relu):
    # (TM, Cin) @ (Cin, Cout) on the MXU, folded-BN bias (+ optional ReLU).
    y = jnp.dot(x_ref[...], w_ref[...], preferred_element_type=jnp.float32)
    y = y + b_ref[...]
    if relu:
        y = jnp.maximum(y, 0.0)
    o_ref[...] = y.astype(o_ref.dtype)


def _block_s1_kernel(x_ref, w1_ref, b1_ref, wd_ref, bd_ref, w2_ref, b2_ref,
                     s1_ref, o_ref, pad_ref, *, M, W, Cb, P):
    # Fused stride-1 InvertedResidual with the channel shuffle folded into
    # the output: even output channels = passthrough half (x1 @ sel1), odd
    # output channels = branch2(x2) (w22 / b22 pre-scattered to odd columns).
    x = x_ref[0]                                             # (M, 2*Cb) bf16

    # 1x1 conv (+ folded BN) + ReLU on the second half of the channels.
    h = jnp.dot(x[:, Cb:], w1_ref[...], preferred_element_type=jnp.float32)
    h = jnp.maximum(h + b1_ref[...], 0.0)                    # (M, Cb) f32

    # Depthwise 3x3 / stride 1 / pad 1 on the flat layout via a zero-bordered
    # scratch: only the 2*P border rows are zeroed each step (correct even if
    # the parallel grid is sharded across cores); the middle M rows are fully
    # rewritten every step.
    pad_ref[0:P, :] = jnp.zeros((P, Cb), jnp.float32)
    pad_ref[P + M:2 * P + M, :] = jnp.zeros((P, Cb), jnp.float32)
    pad_ref[P:P + M, :] = h

    # Left/right edge validity masks computed in-kernel (no HBM traffic).
    col = jax.lax.broadcasted_iota(jnp.int32, (M, Cb), 0) % W
    ml = (col >= 1).astype(jnp.float32)
    mr = (col <= W - 2).astype(jnp.float32)

    wd = wd_ref[...]                                         # (9, Cb) f32
    acc = jnp.zeros((M, Cb), jnp.float32)
    for di in range(3):
        base = P + (di - 1) * W
        for dj in range(3):
            t = pad_ref[base + dj - 1:base + dj - 1 + M, :]
            if dj == 0:
                t = t * ml
            elif dj == 2:
                t = t * mr
            acc = acc + t * wd[di * 3 + dj:di * 3 + dj + 1, :]
    acc = acc + bd_ref[...]                                  # dw BN (no ReLU)

    # Second 1x1 (+BN) + ReLU already scattered to the odd output channels,
    # plus the passthrough half scattered to the even output channels.
    y2 = jnp.dot(acc.astype(x.dtype), w2_ref[...],
                 preferred_element_type=jnp.float32)
    y2 = jnp.maximum(y2 + b2_ref[...], 0.0)                  # zeros on even
    y1 = jnp.dot(x[:, :Cb], s1_ref[...],
                 preferred_element_type=jnp.float32)          # zeros on odd
    o_ref[0] = (y1 + y2).astype(o_ref.dtype)


def _block_s2_kernel(xe0_ref, xe1_ref, xe2_ref, xo0_ref, xo1_ref, xo2_ref,
                     wd1_ref, bd1_ref, wp1_ref, bp1_ref,
                     w21_ref, b21_ref, wd2_ref, bd2_ref, w22_ref, b22_ref,
                     o_ref, *, MO, WO):
    # Fully fused stride-2 InvertedResidual (both branches + channel shuffle)
    # on stride-2 parity/column pre-split slabs of the zero-padded input map:
    #   branch1: dw3x3/s2 + BN on x            -> 1x1+BN+ReLU -> even channels
    #   branch2: 1x1+BN+ReLU (applied per slab, padded rows re-masked to 0)
    #            -> dw3x3/s2 + BN              -> 1x1+BN+ReLU -> odd channels
    wd1 = wd1_ref[...]                                       # (9, Cin) f32
    wd2 = wd2_ref[...]                                       # (9, Cb)  f32
    cin = wd1.shape[1]
    cb = wd2.shape[1]

    acc1 = jnp.zeros((MO, cin), jnp.float32)
    acc2 = jnp.zeros((MO, cb), jnp.float32)
    pairs = ((xe0_ref, xo0_ref), (xe1_ref, xo1_ref), (xe2_ref, xo2_ref))
    for dj, (e_ref, od_ref) in enumerate(pairs):
        e = e_ref[0]                                         # ((Ho+1)*Wo, Cin)
        od = od_ref[0]                                       # (Ho*Wo, Cin)
        ef = e.astype(jnp.float32)
        of = od.astype(jnp.float32)

        # branch1 depthwise taps directly on the raw (zero-padded) slabs.
        acc1 = acc1 + ef[0:MO, :] * wd1[dj:dj + 1, :]              # di = 0
        acc1 = acc1 + of * wd1[3 + dj:4 + dj, :]                   # di = 1
        acc1 = acc1 + ef[WO:WO + MO, :] * wd1[6 + dj:7 + dj, :]    # di = 2

        # branch2: 1x1+BN+ReLU applied per slab (the 1x1 commutes with the
        # stride-2 subsampling); zero-padded input positions would otherwise
        # become relu(bias), so mask them back to zero (top padded row lives
        # in the even slabs' first Wo rows, the left padded column only in
        # the dj == 0 slabs at col index 0; right/bottom padding never read).
        he = jnp.maximum(jnp.dot(e, w21_ref[...],
                                 preferred_element_type=jnp.float32)
                         + b21_ref[...], 0.0)                # (Me, Cb)
        ho = jnp.maximum(jnp.dot(od, w21_ref[...],
                                 preferred_element_type=jnp.float32)
                         + b21_ref[...], 0.0)                # (MO, Cb)
        me = he.shape[0]
        row_e = jax.lax.broadcasted_iota(jnp.int32, (me, cb), 0)
        mask_e = row_e >= WO
        if dj == 0:
            mask_e = jnp.logical_and(mask_e, (row_e % WO) != 0)
            row_o = jax.lax.broadcasted_iota(jnp.int32, (MO, cb), 0)
            ho = ho * ((row_o % WO) != 0).astype(jnp.float32)
        he = he * mask_e.astype(jnp.float32)

        acc2 = acc2 + he[0:MO, :] * wd2[dj:dj + 1, :]              # di = 0
        acc2 = acc2 + ho * wd2[3 + dj:4 + dj, :]                   # di = 1
        acc2 = acc2 + he[WO:WO + MO, :] * wd2[6 + dj:7 + dj, :]    # di = 2

    acc1 = acc1 + bd1_ref[...]                               # dw BN (no ReLU)
    acc2 = acc2 + bd2_ref[...]

    y1 = jnp.maximum(jnp.dot(acc1.astype(o_ref.dtype), wp1_ref[...],
                             preferred_element_type=jnp.float32)
                     + bp1_ref[...], 0.0)                    # even channels
    y2 = jnp.maximum(jnp.dot(acc2.astype(o_ref.dtype), w22_ref[...],
                             preferred_element_type=jnp.float32)
                     + b22_ref[...], 0.0)                    # odd channels
    o_ref[0] = (y1 + y2).astype(o_ref.dtype)


def _maxpool_s2_kernel(xe0_ref, xe1_ref, xe2_ref, xo0_ref, xo1_ref, xo2_ref,
                       o_ref, *, MO, WO):
    # 3x3 / stride 2 / pad 1 max pooling over the pre-split slab layout.
    res = None
    pairs = ((xe0_ref, xo0_ref), (xe1_ref, xo1_ref), (xe2_ref, xo2_ref))
    for e_ref, od_ref in pairs:
        e = e_ref[0]
        for t in (e[0:MO, :], od_ref[0], e[WO:WO + MO, :]):
            res = t if res is None else jnp.maximum(res, t)
    o_ref[0] = res.astype(o_ref.dtype)


def _head_kernel(x_ref, w5_ref, b5_ref, wf_ref, bf_ref, o_ref, *, HW):
    # conv5 (1x1 + BN + ReLU) -> per-sample global mean -> FC.  One sample
    # per grid step ("parallel") and no dense pooling matrix in HBM.
    h = jnp.dot(x_ref[0], w5_ref[...], preferred_element_type=jnp.float32)
    h = jnp.maximum(h + b5_ref[...], 0.0)                    # (HW, C5)
    pooled = jnp.sum(h, axis=0, keepdims=True) * (1.0 / HW)  # (1, C5)
    y = jnp.dot(pooled, wf_ref[...],
                preferred_element_type=jnp.float32) + bf_ref[...]
    o_ref[0] = y.astype(o_ref.dtype)


# ---------------------------------------------------------------------------
# Kernel wrappers
# ---------------------------------------------------------------------------

def _choose_tm(m, lanes, bytes_per=2, budget=8 * 1024 * 1024):
    # Largest row tile (multiple of 8, <= 1024) within a conservative VMEM
    # budget, capped so a "parallel" grid keeps >= 2 steps (v7x megacore).
    per_row = max(1, 4 * lanes * bytes_per)
    cap = max(8, budget // per_row)
    tm = min(1024, cap, m)
    tm = max(8, (tm // 8) * 8)
    if tm >= m and m > 8:
        tm = max(8, (pl.cdiv(m, 2) // 8) * 8)
    return tm


def pointwise(x, w, b, relu):
    # x: (M, Cin), w: (Cin, Cout) with BN scale folded, b: (1, Cout) f32.
    m, cin = x.shape
    cout = w.shape[1]
    tm = _choose_tm(m, cin + cout)
    mp = pl.cdiv(m, tm) * tm
    if mp != m:
        x = jnp.pad(x, ((0, mp - m), (0, 0)))
    out = pl.pallas_call(
        functools.partial(_pw_kernel, relu=relu),
        out_shape=jax.ShapeDtypeStruct((mp, cout), x.dtype),
        grid=(mp // tm,),
        in_specs=[pl.BlockSpec((tm, cin), lambda i: (i, 0)),
                  pl.BlockSpec((cin, cout), lambda i: (0, 0)),
                  pl.BlockSpec((1, cout), lambda i: (0, 0))],
        out_specs=pl.BlockSpec((tm, cout), lambda i: (i, 0)),
        compiler_params=pltpu.CompilerParams(
            dimension_semantics=("parallel",),
            vmem_limit_bytes=_VMEM_LIMIT),
    )(x, w, b)
    return out[:m] if mp != m else out


def block_stride1(p, x, h, w):
    # x: (N, H*W, C) flat, C = 2 * branch_features.  Output is already
    # channel-shuffled.
    n, m, c = x.shape
    cb = c // 2
    pad_rows = max(8, ((w + 1 + 7) // 8) * 8)        # 8-aligned, >= W + 1
    return pl.pallas_call(
        functools.partial(_block_s1_kernel, M=m, W=w, Cb=cb, P=pad_rows),
        out_shape=jax.ShapeDtypeStruct((n, m, c), x.dtype),
        grid=(n,),
        in_specs=[pl.BlockSpec((1, m, c), lambda i: (i, 0, 0)),
                  pl.BlockSpec((cb, cb), lambda i: (0, 0)),
                  pl.BlockSpec((1, cb), lambda i: (0, 0)),
                  pl.BlockSpec((9, cb), lambda i: (0, 0)),
                  pl.BlockSpec((1, cb), lambda i: (0, 0)),
                  pl.BlockSpec((cb, c), lambda i: (0, 0)),
                  pl.BlockSpec((1, c), lambda i: (0, 0)),
                  pl.BlockSpec((cb, c), lambda i: (0, 0))],
        out_specs=pl.BlockSpec((1, m, c), lambda i: (i, 0, 0)),
        scratch_shapes=[pltpu.VMEM((2 * pad_rows + m, cb), jnp.float32)],
        compiler_params=pltpu.CompilerParams(
            dimension_semantics=("parallel",),
            vmem_limit_bytes=_VMEM_LIMIT),
    )(x, p['w21'], p['b21'], p['wd2'], p['bd2'], p['w22'], p['b22'],
      p['sel1'])


def _split_taps_s2(xp, ho, wo):
    # xp: (N, H+2, W+2, C) padded map.  Per column offset dj in {0,1,2},
    # returns the even-row and odd-row stride-2 column-subsampled slabs,
    # flattened to (N, rows*wo, C).
    n, _, _, c = xp.shape
    te, to = [], []
    for dj in range(3):
        col = xp[:, :, dj:dj + 2 * wo - 1:2, :]              # (N, H+2, wo, C)
        te.append(col[:, 0:2 * ho + 1:2].reshape(n, (ho + 1) * wo, c))
        to.append(col[:, 1:2 * ho:2].reshape(n, ho * wo, c))
    return te, to


def block_stride2(p, x, h, w):
    # x: (N, H*W, Cin) flat.  Returns shuffled (N, Ho*Wo, out_c), Ho, Wo.
    n, m, cin = x.shape
    cb = p['w21'].shape[1]
    c = p['w22'].shape[1]                    # = out_c (scattered weights)
    assert h % 2 == 0 and w % 2 == 0
    ho, wo = h // 2, w // 2
    mo = ho * wo
    xs = x.reshape(n, h, w, cin)
    xp = jnp.pad(xs, ((0, 0), (1, 1), (1, 1), (0, 0)))
    te, to = _split_taps_s2(xp, ho, wo)
    out = pl.pallas_call(
        functools.partial(_block_s2_kernel, MO=mo, WO=wo),
        out_shape=jax.ShapeDtypeStruct((n, mo, c), x.dtype),
        grid=(n,),
        in_specs=[pl.BlockSpec((1, (ho + 1) * wo, cin), lambda i: (i, 0, 0))] * 3
        + [pl.BlockSpec((1, mo, cin), lambda i: (i, 0, 0))] * 3
        + [pl.BlockSpec((9, cin), lambda i: (0, 0)),
           pl.BlockSpec((1, cin), lambda i: (0, 0)),
           pl.BlockSpec((cin, c), lambda i: (0, 0)),
           pl.BlockSpec((1, c), lambda i: (0, 0)),
           pl.BlockSpec((cin, cb), lambda i: (0, 0)),
           pl.BlockSpec((1, cb), lambda i: (0, 0)),
           pl.BlockSpec((9, cb), lambda i: (0, 0)),
           pl.BlockSpec((1, cb), lambda i: (0, 0)),
           pl.BlockSpec((cb, c), lambda i: (0, 0)),
           pl.BlockSpec((1, c), lambda i: (0, 0))],
        out_specs=pl.BlockSpec((1, mo, c), lambda i: (i, 0, 0)),
        compiler_params=pltpu.CompilerParams(
            dimension_semantics=("parallel",),
            vmem_limit_bytes=_VMEM_LIMIT),
    )(*te, *to,
      p['wd1'], p['bd1'], p['wp1'], p['bp1'],
      p['w21'], p['b21'], p['wd2'], p['bd2'], p['w22'], p['b22'])
    return out, ho, wo


def maxpool_3x3_s2(x, h, w):
    # x: (N, H*W, C) flat.  Returns (N, Ho*Wo, C), Ho, Wo.
    n, _, c = x.shape
    assert h % 2 == 0 and w % 2 == 0
    ho, wo = h // 2, w // 2
    mo = ho * wo
    xs = x.reshape(n, h, w, c)
    xp = jnp.pad(xs, ((0, 0), (1, 1), (1, 1), (0, 0)),
                 constant_values=float('-inf'))
    te, to = _split_taps_s2(xp, ho, wo)
    out = pl.pallas_call(
        functools.partial(_maxpool_s2_kernel, MO=mo, WO=wo),
        out_shape=jax.ShapeDtypeStruct((n, mo, c), x.dtype),
        grid=(n,),
        in_specs=[pl.BlockSpec((1, (ho + 1) * wo, c), lambda i: (i, 0, 0))] * 3
        + [pl.BlockSpec((1, mo, c), lambda i: (i, 0, 0))] * 3,
        out_specs=pl.BlockSpec((1, mo, c), lambda i: (i, 0, 0)),
        compiler_params=pltpu.CompilerParams(
            dimension_semantics=("parallel",),
            vmem_limit_bytes=_VMEM_LIMIT),
    )(*te, *to)
    return out, ho, wo


def head(params, x):
    # x: (N, HW, C4) flat.  conv5 + global mean + fc, per sample.
    n, hw, c4 = x.shape
    c5 = params['conv5_w'].shape[1]
    ncls = params['fc_b'].shape[0]
    out = pl.pallas_call(
        functools.partial(_head_kernel, HW=hw),
        out_shape=jax.ShapeDtypeStruct((n, 1, ncls), jnp.float32),
        grid=(n,),
        in_specs=[pl.BlockSpec((1, hw, c4), lambda i: (i, 0, 0)),
                  pl.BlockSpec((c4, c5), lambda i: (0, 0)),
                  pl.BlockSpec((1, c5), lambda i: (0, 0)),
                  pl.BlockSpec((c5, ncls), lambda i: (0, 0)),
                  pl.BlockSpec((1, ncls), lambda i: (0, 0))],
        out_specs=pl.BlockSpec((1, 1, ncls), lambda i: (i, 0, 0)),
        compiler_params=pltpu.CompilerParams(
            dimension_semantics=("parallel",),
            vmem_limit_bytes=_VMEM_LIMIT),
    )(x, params['conv5_w'], params['conv5_b'],
      params['fc_w'], params['fc_b'].reshape(1, -1))
    return out.reshape(n, ncls)


# ---------------------------------------------------------------------------
# JAX glue
# ---------------------------------------------------------------------------

def im2col_3x3(x, stride, pad_value):
    # x: (N, H, W, C) -> (N, Ho, Wo, 9, C), 3x3 window, padding 1.
    n, h, w, c = x.shape
    xp = jnp.pad(x, ((0, 0), (1, 1), (1, 1), (0, 0)), constant_values=pad_value)
    ho = (h + 2 - 3) // stride + 1
    wo = (w + 2 - 3) // stride + 1
    patches = []
    for di in range(3):
        for dj in range(3):
            patches.append(xp[:, di:di + (ho - 1) * stride + 1:stride,
                              dj:dj + (wo - 1) * stride + 1:stride, :])
    return jnp.stack(patches, axis=3)


def shufflenet_v2_forward(params, x_nchw):
    x_img = jnp.transpose(x_nchw, (0, 2, 3, 1))              # NCHW -> NHWC
    n = x_img.shape[0]

    # conv1: 3x3 / s2 / p1 + BN + ReLU (im2col of the 3-channel image is cheap).
    patches = im2col_3x3(x_img, stride=2, pad_value=0.0)     # (N, H1, W1, 9, 3)
    h, w = patches.shape[1], patches.shape[2]
    xf = patches.reshape(n * h * w, -1).astype(ACT_DTYPE)
    x = pointwise(xf, params['conv1_w'], params['conv1_b'], relu=True)
    x = x.reshape(n, h * w, -1)                              # flat NHWC, bf16

    # maxpool 3x3 / s2 / p1
    x, h, w = maxpool_3x3_s2(x, h, w)

    # stages 2..4 (each block kernel already emits the shuffled output)
    for name in ('stage2', 'stage3', 'stage4'):
        for blk in params[name]:
            if blk['stride'] == 2:
                x, h, w = block_stride2(blk, x, h, w)
            else:
                x = block_stride1(blk, x, h, w)

    # conv5 + global average pool + fc (fused, gridded over the batch).
    return head(params, x)


# ---------------------------------------------------------------------------
# Deterministic parameter construction (inference-mode BN folded into weights,
# channel shuffle folded into the output scatter of each block).
# ---------------------------------------------------------------------------

def _bn_affine(key, c):
    k1, k2, k3, k4 = jax.random.split(key, 4)
    gamma = jax.random.uniform(k1, (c,), minval=0.5, maxval=1.5)
    beta = 0.1 * jax.random.normal(k2, (c,))
    mean = 0.1 * jax.random.normal(k3, (c,))
    var = jax.random.uniform(k4, (c,), minval=0.5, maxval=1.5)
    scale = gamma * jax.lax.rsqrt(var + 1e-5)
    bias = beta - mean * scale
    return scale.astype(jnp.float32), bias.astype(jnp.float32)


def fold_pw(kw, kbn, cin, cout):
    # Conv2d(cin, cout, 1, bias=False) + BatchNorm2d -> (Cin, Cout) weight with
    # the BN scale folded into the columns, plus a (1, Cout) f32 bias.
    w = 0.1 * jax.random.normal(kw, (cout, cin))
    scale, bias = _bn_affine(kbn, cout)
    return (w.T * scale[None, :]).astype(ACT_DTYPE), bias.reshape(1, cout)


def fold_dw(kw, kbn, c):
    # Depthwise Conv2d(c, c, 3, groups=c) + BN -> (9, C) tap-major weights with
    # the per-channel BN scale folded in, plus a (1, C) f32 bias.
    w = 0.1 * jax.random.normal(kw, (c, 3, 3))
    scale, bias = _bn_affine(kbn, c)
    return ((w.reshape(c, 9).T) * scale[None, :]).astype(jnp.float32), \
        bias.reshape(1, c)


def fold_conv3x3(kw, kbn, cin, cout):
    # Conv2d(cin, cout, 3) + BN -> (9*Cin, Cout), tap-major / channel-minor,
    # matching im2col_3x3's patch layout, BN scale folded.
    w = 0.1 * jax.random.normal(kw, (cout, cin, 3, 3))
    scale, bias = _bn_affine(kbn, cout)
    wf = jnp.transpose(w, (2, 3, 1, 0)).reshape(9 * cin, cout) * scale[None, :]
    return wf.astype(ACT_DTYPE), bias.reshape(1, cout)


def _scatter_cols(w, b, parity):
    # (Cin, Cb) / (1, Cb) -> (Cin, 2*Cb) / (1, 2*Cb) with the columns placed
    # at output channels parity, parity+2, ...  (channel shuffle folded in).
    cin, cb = w.shape
    ws = jnp.zeros((cin, 2 * cb), w.dtype).at[:, parity::2].set(w)
    bs = jnp.zeros((1, 2 * cb), b.dtype).at[:, parity::2].set(b)
    return ws, bs


def make_block_params(key, in_c, out_c, stride):
    assert stride in (1, 2) and out_c % 2 == 0
    cb = out_c // 2
    assert stride != 1 or in_c == cb * 2
    keys = jax.random.split(key, 10)
    p = {'stride': stride}
    if stride == 2:
        p['wd1'], p['bd1'] = fold_dw(keys[0], keys[1], in_c)
        wp1, bp1 = fold_pw(keys[2], keys[3], in_c, cb)
        p['wp1'], p['bp1'] = _scatter_cols(wp1, bp1, 0)      # even out cols
    b2_in = in_c if stride == 2 else cb
    p['w21'], p['b21'] = fold_pw(keys[4], keys[5], b2_in, cb)
    p['wd2'], p['bd2'] = fold_dw(keys[6], keys[7], cb)
    w22, b22 = fold_pw(keys[8], keys[9], cb, cb)
    p['w22'], p['b22'] = _scatter_cols(w22, b22, 1)          # odd out cols
    if stride == 1:
        # passthrough half -> even output columns (shuffle folded in).
        p['sel1'] = jnp.zeros((cb, out_c), ACT_DTYPE).at[:, 0::2].set(
            jnp.eye(cb, dtype=ACT_DTYPE))
    return p


def make_shufflenet_params(key, stages_repeats, stages_out_channels, num_classes):
    assert len(stages_repeats) == 3 and len(stages_out_channels) == 5
    params = {}
    keys = jax.random.split(key, 8)
    in_c = 3
    out_c = stages_out_channels[0]
    params['conv1_w'], params['conv1_b'] = fold_conv3x3(keys[0], keys[1],
                                                        in_c, out_c)
    in_c = out_c
    stage_keys = jax.random.split(keys[2], 3)
    for si, (name, repeats, out_c) in enumerate(
            zip(('stage2', 'stage3', 'stage4'), stages_repeats,
                stages_out_channels[1:])):
        bkeys = jax.random.split(stage_keys[si], repeats)
        blocks = [make_block_params(bkeys[0], in_c, out_c, 2)]
        for r in range(1, repeats):
            blocks.append(make_block_params(bkeys[r], out_c, out_c, 1))
        params[name] = blocks
        in_c = out_c
    c5 = stages_out_channels[-1]
    params['conv5_w'], params['conv5_b'] = fold_pw(keys[3], keys[4], in_c, c5)
    params['fc_w'] = (0.05 * jax.random.normal(keys[5], (c5, num_classes))
                      ).astype(jnp.float32)            # stored as W.T
    params['fc_b'] = (0.1 * jax.random.normal(keys[6], (num_classes,))
                      ).astype(jnp.float32)
    return params


# ---------------------------------------------------------------------------

if __name__ == "__main__":
    key = jax.random.PRNGKey(0)
    pkey, xkey = jax.random.split(key)

    # Small synthetic config with the same structure/asserts as the PyTorch
    # module.  64x64 input: 64 -> 32 (conv1) -> 16 (maxpool) -> 8 -> 4 -> 2.
    stages_repeats = [2, 2, 2]
    stages_out_channels = [8, 16, 32, 64, 128]
    num_classes = 10

    params = make_shufflenet_params(pkey, stages_repeats, stages_out_channels,
                                    num_classes)

    x = jax.random.normal(xkey, (2, 3, 64, 64), dtype=jnp.float32)

    logits = shufflenet_v2_forward(params, x)
    logits = jax.block_until_ready(logits)

    assert logits.shape == (2, num_classes)
    assert bool(jnp.all(jnp.isfinite(logits)))
    print("KERNEL_OK")
</pallas_src>

<mosaic_0001>
module attributes {stable_mosaic.version = 11 : i64} {
  func.func @_pw_kernel(%arg0: i32, %arg1: memref<1024x27xbf16, #tpu.memory_space<vmem>>, %arg2: memref<27x8xbf16, #tpu.memory_space<vmem>>, %arg3: memref<1x8xf32, #tpu.memory_space<vmem>>, %arg4: memref<1024x8xbf16, #tpu.memory_space<vmem>>) attributes {dimension_semantics = [#tpu.dimension_semantics<parallel>], iteration_bounds = array<i64: 2>, scalar_prefetch = 0 : i64, scratch_operands = 0 : i64, tpu.core_type = #tpu.core_type<tc>, window_params = [{transform_indices = @transform_0, window_bounds = array<i64: 1024, 27>}, {pipeline_mode = #tpu.pipeline_mode<synchronous>, transform_indices = @transform_1, window_bounds = array<i64: 27, 8>}, {pipeline_mode = #tpu.pipeline_mode<synchronous>, transform_indices = @transform_2, window_bounds = array<i64: 1, 8>}, {transform_indices = @transform_3, window_bounds = array<i64: 1024, 8>}]} {
    %c0 = arith.constant 0 : index
    %c0_0 = arith.constant 0 : index
    %0 = vector.load %arg1[%c0, %c0_0] : memref<1024x27xbf16, #tpu.memory_space<vmem>>, vector<1024x27xbf16>
    %c0_1 = arith.constant 0 : index
    %c0_2 = arith.constant 0 : index
    %1 = vector.load %arg2[%c0_1, %c0_2] : memref<27x8xbf16, #tpu.memory_space<vmem>>, vector<27x8xbf16>
    %cst = arith.constant dense<0.000000e+00> : vector<1024x8xf32>
    %2 = tpu.matmul %0, %1, %cst {dimension_numbers = #tpu.dot_dimension_numbers<[1], [0], [0], [1], [0, 0, 1, 1], [], []>} : vector<1024x27xbf16>, vector<27x8xbf16>, vector<1024x8xf32> -> vector<1024x8xf32>
    %c0_3 = arith.constant 0 : index
    %c0_4 = arith.constant 0 : index
    %3 = vector.load %arg3[%c0_3, %c0_4] : memref<1x8xf32, #tpu.memory_space<vmem>>, vector<1x8xf32>
    %4 = vector.broadcast %3 : vector<1x8xf32> to vector<1024x8xf32>
    %5 = arith.addf %2, %4 : vector<1024x8xf32>
    %cst_5 = arith.constant 0.000000e+00 : f32
    %6 = vector.broadcast %cst_5 : f32 to vector<1024x8xf32>
    %7 = arith.maximumf %5, %6 : vector<1024x8xf32>
    %8 = arith.truncf %7 : vector<1024x8xf32> to vector<1024x8xbf16>
    %c0_6 = arith.constant 0 : index
    %c0_7 = arith.constant 0 : index
    %9 = vector.load %arg4[%c0_6, %c0_7] : memref<1024x8xbf16, #tpu.memory_space<vmem>>, vector<1024x8xbf16>
    tpu.vector_store %arg4[%c0_6, %c0_7], %8 {strides = array<i32>} : memref<1024x8xbf16, #tpu.memory_space<vmem>>, vector<1024x8xbf16>,
    return
  }
  func.func @transform_0(%arg0: i32) -> (i32, i32) {
    %c0_i32 = arith.constant 0 : i32
    %c0_i32_0 = arith.constant 0 : i32
    return %arg0, %c0_i32 : i32, i32
  }
  func.func @transform_1(%arg0: i32) -> (i32, i32) {
    %c0_i32 = arith.constant 0 : i32
    %c0_i32_0 = arith.constant 0 : i32
    %c0_i32_1 = arith.constant 0 : i32
    return %c0_i32, %c0_i32_0 : i32, i32
  }
  func.func @transform_2(%arg0: i32) -> (i32, i32) {
    %c0_i32 = arith.constant 0 : i32
    %c0_i32_0 = arith.constant 0 : i32
    %c0_i32_1 = arith.constant 0 : i32
    return %c0_i32, %c0_i32_0 : i32, i32
  }
  func.func @transform_3(%arg0: i32) -> (i32, i32) {
    %c0_i32 = arith.constant 0 : i32
    %c0_i32_0 = arith.constant 0 : i32
    return %arg0, %c0_i32 : i32, i32
  }
}

</mosaic_0001>

<llo_original>
// kernel: tpu_custom_call.1
$region0: #{tpu_custom_call.1}
  #allocation0 [shape = 'u32[]', space=smem, size = 0x4, offset = 0x4, fixed_abs, tag = 'smem constant byte address 0x4 - core index']
  #allocation1 [shape = 'u32[72,128]{1,0:T(1,128)}', space=vmem, size = 0x9000, scoped, tag = 'internal scratch']
  %s0 = inlined_call_operand.vmem [shape: bf16[2048,27], index: 0, kind: input, shape index: {}]
  %s1 = inlined_call_operand.vmem [shape: bf16[27,8], index: 1, kind: input, shape index: {}]
  %s2 = inlined_call_operand.vmem [shape: f32[1,8], index: 2, kind: input, shape index: {}]
  %s3 = inlined_call_operand.vmem [shape: bf16[2048,8], index: 3, kind: output, shape index: {}]
  %s4 = sld [smem:[#allocation0]]
  $region45: #{tpu_custom_call.1} parent=0
    _
  %s6 = ssub.s32 1, %s4
  %s7 = scalar_select 0, %s6, %s4
  loop: start=0, step=1, limit=4
  $region2: #{tpu_custom_call.1} parent=0 // loop_pre_header
    _
  $region3: #{tpu_custom_call.1} parent=0 // loop_header
    %s9 = sphi 0, %s13
    %p10 = scmp.ge.s32.totalorder %s9, 4
    %s19 = sphi 0, %s21
    %s22 = sphi 0, %s19
    %s23 = sphi 0, %s22
    %s39 = sphi 0, %s23
    %s43 = sphi 0, %s43
    %s45 = sphi 0, %s43
    %s46 = sphi 0, %s45
    %s60 = sphi 0, %s46
    %s64 = sphi 0, %s64
    %s66 = sphi 0, %s64
    %s67 = sphi 0, %s66
    %s81 = sphi 0, %s67
    %s87 = sphi 0, %s89
    %s90 = sphi 0, %s87
    %s91 = sphi 0, %s90
    %s107 = sphi 0, %s91
  $region4: #{tpu_custom_call.1} parent=0 // loop_header_branch
    %12 = sbr.rel (%p10) target = $region8
  $region5: #{tpu_custom_call.1} parent=0 // loop_body
    %s14 = ssub.s32 %s9, 1
    %s15 = ssub.s32 %s9, 2
    %s16 = sadd.s32 %s9, 1
    %s17 = ssub.s32 %s9, %s16
    %p18 = scmp.eq.s32.totalorder %s17, 0
    %s20 = sadd.s32 %s19, 1
    %s21 = scalar_select %p18, %s19, %s20
    %p24 = pneg %p18
    %p25 = scmp.eq.s32.totalorder %s9, 1
    %p26 = por %p24, %p25
    %p27 = scmp.ne.s32.totalorder %s19, %s22
    %p28 = scmp.eq.s32.totalorder %s9, 0
    %p29 = por %p27, %p28
    %p30 = scmp.ne.s32.totalorder %s19, %s22
    %p31 = scmp.eq.s32.totalorder %s14, 1
    %p32 = por %p30, %p31
    %p33 = scmp.ne.s32.totalorder %s22, %s23
    %p34 = scmp.eq.s32.totalorder %s14, 0
    %p35 = por %p33, %p34
    %p36 = scmp.ne.s32.totalorder %s22, %s23
    %p37 = scmp.eq.s32.totalorder %s15, 1
    %p38 = por %p36, %p37
    %p40 = scmp.ne.s32.totalorder %s23, %s39
    %p41 = scmp.eq.s32.totalorder %s15, 0
    %p42 = por %p40, %p41
    %s44 = sadd.s32 %s43, 1
    %p47 = scmp.eq.s32.totalorder %s9, 1
    %p48 = scmp.ne.s32.totalorder %s43, %s45
    %p49 = scmp.eq.s32.totalorder %s9, 0
    %p50 = por %p48, %p49
    %p51 = scmp.ne.s32.totalorder %s43, %s45
    %p52 = scmp.eq.s32.totalorder %s14, 1
    %p53 = por %p51, %p52
    %p54 = scmp.ne.s32.totalorder %s45, %s46
    %p55 = scmp.eq.s32.totalorder %s14, 0
    %p56 = por %p54, %p55
    %p57 = scmp.ne.s32.totalorder %s45, %s46
    %p58 = scmp.eq.s32.totalorder %s15, 1
    %p59 = por %p57, %p58
    %p61 = scmp.ne.s32.totalorder %s46, %s60
    %p62 = scmp.eq.s32.totalorder %s15, 0
    %p63 = por %p61, %p62
    %s65 = sadd.s32 %s64, 1
    %p68 = scmp.eq.s32.totalorder %s9, 1
    %p69 = scmp.ne.s32.totalorder %s64, %s66
    %p70 = scmp.eq.s32.totalorder %s9, 0
    %p71 = por %p69, %p70
    %p72 = scmp.ne.s32.totalorder %s64, %s66
    %p73 = scmp.eq.s32.totalorder %s14, 1
    %p74 = por %p72, %p73
    %p75 = scmp.ne.s32.totalorder %s66, %s67
    %p76 = scmp.eq.s32.totalorder %s14, 0
    %p77 = por %p75, %p76
    %p78 = scmp.ne.s32.totalorder %s66, %s67
    %p79 = scmp.eq.s32.totalorder %s15, 1
    %p80 = por %p78, %p79
    %p82 = scmp.ne.s32.totalorder %s67, %s81
    %p83 = scmp.eq.s32.totalorder %s15, 0
    %p84 = por %p82, %p83
    %s85 = ssub.s32 %s9, %s16
    %p86 = scmp.eq.s32.totalorder %s85, 0
    %s88 = sadd.s32 %s87, 1
    %s89 = scalar_select %p86, %s87, %s88
    %p92 = pneg %p86
    %p93 = scmp.eq.s32.totalorder %s9, 1
    %p94 = por %p92, %p93
    %p95 = scmp.ne.s32.totalorder %s87, %s90
    %p96 = scmp.eq.s32.totalorder %s9, 0
    %p97 = por %p95, %p96
    %p98 = scmp.ne.s32.totalorder %s87, %s90
    %p99 = scmp.eq.s32.totalorder %s14, 1
    %p100 = por %p98, %p99
    %p101 = scmp.ne.s32.totalorder %s90, %s91
    %p102 = scmp.eq.s32.totalorder %s14, 0
    %p103 = por %p101, %p102
    %p104 = scmp.ne.s32.totalorder %s90, %s91
    %p105 = scmp.eq.s32.totalorder %s15, 1
    %p106 = por %p104, %p105
    %p108 = scmp.ne.s32.totalorder %s91, %s107
    %p109 = scmp.eq.s32.totalorder %s15, 0
    %p110 = por %p108, %p109
    %p111 = scmp.le.s32.totalorder 1, %s9
    %p112 = scmp.lt.s32.totalorder %s9, 3
    %p113 = pnand %p111, %p112
    %p114 = pneg %p113
    // Predicated region
    $region9: #{tpu_custom_call.1} parent=5 // pred_check
      _
    $region10: #{tpu_custom_call.1} parent=5 // pred_check_branch
      %116 = sbr.rel (%p113) target = $region12
    $region11: #{tpu_custom_call.1} parent=5 // pred_region
      %s117 = ssub.s32 %s9, 1
      // Predicated region
      $region13: #{tpu_custom_call.1} parent=11 // pred_check
        %p118 = pneg %p56
      $region14: #{tpu_custom_call.1} parent=11 // pred_check_branch
        %120 = sbr.rel (%p118) target = $region16
      $region15: #{tpu_custom_call.1} parent=11 // pred_region
        _
      $region16: #{tpu_custom_call.1} parent=11 // pred_fallthru
        _
      // Predicated region
      $region17: #{tpu_custom_call.1} parent=11 // pred_check
        %p121 = pneg %p77
      $region18: #{tpu_custom_call.1} parent=11 // pred_check_branch
        %123 = sbr.rel (%p121) target = $region20
      $region19: #{tpu_custom_call.1} parent=11 // pred_region
        _
      $region20: #{tpu_custom_call.1} parent=11 // pred_fallthru
        _
    $region12: #{tpu_custom_call.1} parent=5 // pred_fallthru
      _
    %p124 = scmp.lt.s32.totalorder %s9, 2
    // Predicated region
    $region21: #{tpu_custom_call.1} parent=5 // pred_check
      %p125 = pneg %p124
    $region22: #{tpu_custom_call.1} parent=5 // pred_check_branch
      %127 = sbr.rel (%p125) target = $region24
    $region23: #{tpu_custom_call.1} parent=5 // pred_region
      // Predicated region
      $region25: #{tpu_custom_call.1} parent=23 // pred_check
        %p128 = pneg %p29
      $region26: #{tpu_custom_call.1} parent=23 // pred_check_branch
        %130 = sbr.rel (%p128) target = $region28
      $region27: #{tpu_custom_call.1} parent=23 // pred_region
        %s131 = smul.u32 128, %s9
        %p132 = scmp.lt.s32.totalorder %s131, 255
        %s133 = scalar_select %p132, %s131, 255
        %s134 = smul.addr %s133, 4
        %s135 = scalar_lea.vmem %s0, %s134
        %s136 = smul.u32 128, %s9
      $region28: #{tpu_custom_call.1} parent=23 // pred_fallthru
        _
    $region24: #{tpu_custom_call.1} parent=5 // pred_fallthru
      _
    %p137 = scmp.le.s32.totalorder 1, %s9
    %p138 = scmp.lt.s32.totalorder %s9, 3
    %p139 = pnand %p137, %p138
    %p140 = pneg %p139
    // Predicated region
    $region29: #{tpu_custom_call.1} parent=5 // pred_check
      _
    $region30: #{tpu_custom_call.1} parent=5 // pred_check_branch
      %142 = sbr.rel (%p139) target = $region32
    $region31: #{tpu_custom_call.1} parent=5 // pred_region
      %s143 = ssub.s32 %s9, 1
      %s144 = smul.u32 128, %s14
      %p145 = scmp.lt.s32.totalorder %s144, 255
      %s146 = scalar_select %p145, %s144, 255
      %s147 = smul.addr %s146, 4
      %s148 = scalar_lea.vmem %s0, %s147
      %p149 = pneg %p35
      %p150 = pneg %p32
      %p151 = pneg %p56
      %p152 = pneg %p53
      %p153 = pneg %p77
      %p154 = pneg %p74
      %p155 = pneg %p103
      %p156 = pneg %p100
      %s157 = smul.u32 128, %s14
      %p158 = scmp.lt.s32.totalorder %s157, 255
      %s159 = scalar_select %p158, %s157, 255
      %s160 = smul.addr %s159, 4
      %s161 = scalar_lea.vmem %s3, %s160
      %s162 = smul.u32 128, %s14
      %p163 = scmp.lt.s32.totalorder %s162, 255
      %s164 = scalar_select %p163, %s162, 255
      %s165 = smul.addr %s164, 4
      %s166 = scalar_lea.vmem %s0, %s165
      %s167 = smul.u32 128, %s14
      %s168 = smul.u32 128, %s14
      %p169 = scmp.lt.s32.totalorder %s168, 255
      %s170 = scalar_select %p169, %s168, 255
      %s171 = smul.addr %s170, 4
      %s172 = scalar_lea.vmem %s3, %s171
      %s173 = smul.u32 128, %s14
      %v175 = vld [vmem:[%s166] sm:$0xf]
      %v176 = vld [vmem:[%s166 + $0x4] sm:$0xf]
      %v177 = vld [vmem:[%s166 + $0x8] sm:$0xf]
      %v178 = vld [vmem:[%s166 + $0xc] sm:$0xf]
      %v179 = vld [vmem:[%s166 + $0x10] sm:$0xf]
      %v180 = vld [vmem:[%s166 + $0x14] sm:$0xf]
      %v181 = vld [vmem:[%s166 + $0x18] sm:$0xf]
      %v182 = vld [vmem:[%s166 + $0x1c] sm:$0xf]
      %v183 = vld [vmem:[%s166 + $0x20] sm:$0xf]
      %v184 = vld [vmem:[%s166 + $0x24] sm:$0xf]
      %v185 = vld [vmem:[%s166 + $0x28] sm:$0xf]
      %v186 = vld [vmem:[%s166 + $0x2c] sm:$0xf]
      %v187 = vld [vmem:[%s166 + $0x30] sm:$0xf]
      %v188 = vld [vmem:[%s166 + $0x34] sm:$0xf]
      %v189 = vld [vmem:[%s166 + $0x38] sm:$0xf]
      %v190 = vld [vmem:[%s166 + $0x3c] sm:$0xf]
      %v191 = vld [vmem:[%s166 + $0x40] sm:$0xf]
      %v192 = vld [vmem:[%s166 + $0x44] sm:$0xf]
      %v193 = vld [vmem:[%s166 + $0x48] sm:$0xf]
      %v194 = vld [vmem:[%s166 + $0x4c] sm:$0xf]
      %v195 = vld [vmem:[%s166 + $0x50] sm:$0xf]
      %v196 = vld [vmem:[%s166 + $0x54] sm:$0xf]
      %v197 = vld [vmem:[%s166 + $0x58] sm:$0xf]
      %v198 = vld [vmem:[%s166 + $0x5c] sm:$0xf]
      %v199 = vld [vmem:[%s166 + $0x60] sm:$0xf]
      %v200 = vld [vmem:[%s166 + $0x64] sm:$0xf]
      %v201 = vld [vmem:[%s166 + $0x68] sm:$0xf]
      %v202 = vld [vmem:[%s166 + $0x6c] sm:$0xf]
      %v203 = vld [vmem:[%s166 + $0x70] sm:$0xf]
      %v204 = vld [vmem:[%s166 + $0x74] sm:$0xf]
      %v205 = vld [vmem:[%s166 + $0x78] sm:$0xf]
      %v206 = vld [vmem:[%s166 + $0x7c] sm:$0xf]
      %v207 = vld [vmem:[%s166 + $0x80] sm:$0xf]
      %v208 = vld [vmem:[%s166 + $0x84] sm:$0xf]
      %v209 = vld [vmem:[%s166 + $0x88] sm:$0xf]
      %v210 = vld [vmem:[%s166 + $0x8c] sm:$0xf]
      %v211 = vld [vmem:[%s166 + $0x90] sm:$0xf]
      %v212 = vld [vmem:[%s166 + $0x94] sm:$0xf]
      %v213 = vld [vmem:[%s166 + $0x98] sm:$0xf]
      %v214 = vld [vmem:[%s166 + $0x9c] sm:$0xf]
      %v215 = vld [vmem:[%s166 + $0xa0] sm:$0xf]
      %v216 = vld [vmem:[%s166 + $0xa4] sm:$0xf]
      %v217 = vld [vmem:[%s166 + $0xa8] sm:$0xf]
      %v218 = vld [vmem:[%s166 + $0xac] sm:$0xf]
      %v219 = vld [vmem:[%s166 + $0xb0] sm:$0xf]
      %v220 = vld [vmem:[%s166 + $0xb4] sm:$0xf]
      %v221 = vld [vmem:[%s166 + $0xb8] sm:$0xf]
      %v222 = vld [vmem:[%s166 + $0xbc] sm:$0xf]
      %v223 = vld [vmem:[%s166 + $0xc0] sm:$0xf]
      %v224 = vld [vmem:[%s166 + $0xc4] sm:$0xf]
      %v225 = vld [vmem:[%s166 + $0xc8] sm:$0xf]
      %v226 = vld [vmem:[%s166 + $0xcc] sm:$0xf]
      %v227 = vld [vmem:[%s166 + $0xd0] sm:$0xf]
      %v228 = vld [vmem:[%s166 + $0xd4] sm:$0xf]
      %v229 = vld [vmem:[%s166 + $0xd8] sm:$0xf]
      %v230 = vld [vmem:[%s166 + $0xdc] sm:$0xf]
      %v231 = vld [vmem:[%s166 + $0xe0] sm:$0xf]
      %v232 = vld [vmem:[%s166 + $0xe4] sm:$0xf]
      %v233 = vld [vmem:[%s166 + $0xe8] sm:$0xf]
      %v234 = vld [vmem:[%s166 + $0xec] sm:$0xf]
      %v235 = vld [vmem:[%s166 + $0xf0] sm:$0xf]
      %v236 = vld [vmem:[%s166 + $0xf4] sm:$0xf]
      %v237 = vld [vmem:[%s166 + $0xf8] sm:$0xf]
      %v238 = vld [vmem:[%s166 + $0xfc] sm:$0xf]
      %v239 = vld [vmem:[%s166 + $0x100] sm:$0xf]
      %v240 = vld [vmem:[%s166 + $0x104] sm:$0xf]
      %v241 = vld [vmem:[%s166 + $0x108] sm:$0xf]
      %v242 = vld [vmem:[%s166 + $0x10c] sm:$0xf]
      %v243 = vld [vmem:[%s166 + $0x110] sm:$0xf]
      %v244 = vld [vmem:[%s166 + $0x114] sm:$0xf]
      %v245 = vld [vmem:[%s166 + $0x118] sm:$0xf]
      %v246 = vld [vmem:[%s166 + $0x11c] sm:$0xf]
      %v247 = vld [vmem:[%s166 + $0x120] sm:$0xf]
      %v248 = vld [vmem:[%s166 + $0x124] sm:$0xf]
      %v249 = vld [vmem:[%s166 + $0x128] sm:$0xf]
      %v250 = vld [vmem:[%s166 + $0x12c] sm:$0xf]
      %v251 = vld [vmem:[%s166 + $0x130] sm:$0xf]
      %v252 = vld [vmem:[%s166 + $0x134] sm:$0xf]
      %v253 = vld [vmem:[%s166 + $0x138] sm:$0xf]
      %v254 = vld [vmem:[%s166 + $0x13c] sm:$0xf]
      %v255 = vld [vmem:[%s166 + $0x140] sm:$0xf]
      %v256 = vld [vmem:[%s166 + $0x144] sm:$0xf]
      %v257 = vld [vmem:[%s166 + $0x148] sm:$0xf]
      %v258 = vld [vmem:[%s166 + $0x14c] sm:$0xf]
      %v259 = vld [vmem:[%s166 + $0x150] sm:$0xf]
      %v260 = vld [vmem:[%s166 + $0x154] sm:$0xf]
      %v261 = vld [vmem:[%s166 + $0x158] sm:$0xf]
      %v262 = vld [vmem:[%s166 + $0x15c] sm:$0xf]
      %v263 = vld [vmem:[%s166 + $0x160] sm:$0xf]
      %v264 = vld [vmem:[%s166 + $0x164] sm:$0xf]
      %v265 = vld [vmem:[%s166 + $0x168] sm:$0xf]
      %v266 = vld [vmem:[%s166 + $0x16c] sm:$0xf]
      %v267 = vld [vmem:[%s166 + $0x170] sm:$0xf]
      %v268 = vld [vmem:[%s166 + $0x174] sm:$0xf]
      %v269 = vld [vmem:[%s166 + $0x178] sm:$0xf]
      %v270 = vld [vmem:[%s166 + $0x17c] sm:$0xf]
      %v271 = vld [vmem:[%s166 + $0x180] sm:$0xf]
      %v272 = vld [vmem:[%s166 + $0x184] sm:$0xf]
      %v273 = vld [vmem:[%s166 + $0x188] sm:$0xf]
      %v274 = vld [vmem:[%s166 + $0x18c] sm:$0xf]
      %v275 = vld [vmem:[%s166 + $0x190] sm:$0xf]
      %v276 = vld [vmem:[%s166 + $0x194] sm:$0xf]
      %v277 = vld [vmem:[%s166 + $0x198] sm:$0xf]
      %v278 = vld [vmem:[%s166 + $0x19c] sm:$0xf]
      %v279 = vld [vmem:[%s166 + $0x1a0] sm:$0xf]
      %v280 = vld [vmem:[%s166 + $0x1a4] sm:$0xf]
      %v281 = vld [vmem:[%s166 + $0x1a8] sm:$0xf]
      %v282 = vld [vmem:[%s166 + $0x1ac] sm:$0xf]
      %v283 = vld [vmem:[%s166 + $0x1b0] sm:$0xf]
      %v284 = vld [vmem:[%s166 + $0x1b4] sm:$0xf]
      %v285 = vld [vmem:[%s166 + $0x1b8] sm:$0xf]
      %v286 = vld [vmem:[%s166 + $0x1bc] sm:$0xf]
      %v287 = vld [vmem:[%s166 + $0x1c0] sm:$0xf]
      %v288 = vld [vmem:[%s166 + $0x1c4] sm:$0xf]
      %v289 = vld [vmem:[%s166 + $0x1c8] sm:$0xf]
      %v290 = vld [vmem:[%s166 + $0x1cc] sm:$0xf]
      %v291 = vld [vmem:[%s166 + $0x1d0] sm:$0xf]
      %v292 = vld [vmem:[%s166 + $0x1d4] sm:$0xf]
      %v293 = vld [vmem:[%s166 + $0x1d8] sm:$0xf]
      %v294 = vld [vmem:[%s166 + $0x1dc] sm:$0xf]
      %v295 = vld [vmem:[%s166 + $0x1e0] sm:$0xf]
      %v296 = vld [vmem:[%s166 + $0x1e4] sm:$0xf]
      %v297 = vld [vmem:[%s166 + $0x1e8] sm:$0xf]
      %v298 = vld [vmem:[%s166 + $0x1ec] sm:$0xf]
      %v299 = vld [vmem:[%s166 + $0x1f0] sm:$0xf]
      %v300 = vld [vmem:[%s166 + $0x1f4] sm:$0xf]
      %v301 = vld [vmem:[%s166 + $0x1f8] sm:$0xf]
      %v302 = vld [vmem:[%s166 + $0x1fc] sm:$0xf]
      %v303 = vld [vmem:[%s1] sm:$0xf]
      %v304 = vld [vmem:[%s1 + $0x4] sm:$0xf]
      %v305 = vld [vmem:[%s1 + $0x8] sm:$0xf]
      %v306 = vld [vmem:[%s1 + $0xc] sm:$0x3]
      %v307 = vld [vmem:[%s2] sm:$0x1]
      %v309 = vperm.slane %v307, 0
      %v439 = vunpack.c.l.b16 %v175
      %v440 = vunpack.c.l.b16 %v176
      %v441 = vunpack.c.l.b16 %v177
      %v442 = vunpack.c.l.b16 %v178
      %v443 = vunpack.c.l.b16 %v179
      %v444 = vunpack.c.l.b16 %v180
      %v445 = vunpack.c.l.b16 %v181
      %v446 = vunpack.c.l.b16 %v182
      %v447 = vunpack.c.l.b16 %v183
      %v448 = vunpack.c.l.b16 %v184
      %v449 = vunpack.c.l.b16 %v185
      %v450 = vunpack.c.l.b16 %v186
      %v451 = vunpack.c.l.b16 %v187
      %v452 = vunpack.c.l.b16 %v188
      %v453 = vunpack.c.l.b16 %v189
      %v454 = vunpack.c.l.b16 %v190
      %v455 = vunpack.c.l.b16 %v191
      %v456 = vunpack.c.l.b16 %v192
      %v457 = vunpack.c.l.b16 %v193
      %v458 = vunpack.c.l.b16 %v194
      %v459 = vunpack.c.l.b16 %v195
      %v460 = vunpack.c.l.b16 %v196
      %v461 = vunpack.c.l.b16 %v197
      %v462 = vunpack.c.l.b16 %v198
      %v463 = vunpack.c.l.b16 %v199
      %v464 = vunpack.c.l.b16 %v200
      %v465 = vunpack.c.l.b16 %v201
      %v466 = vunpack.c.l.b16 %v202
      %v467 = vunpack.c.l.b16 %v203
      %v468 = vunpack.c.l.b16 %v204
      %v469 = vunpack.c.l.b16 %v205
      %v470 = vunpack.c.l.b16 %v206
      %v471 = vunpack.c.l.b16 %v207
      %v472 = vunpack.c.l.b16 %v208
      %v473 = vunpack.c.l.b16 %v209
      %v474 = vunpack.c.l.b16 %v210
      %v475 = vunpack.c.l.b16 %v211
      %v476 = vunpack.c.l.b16 %v212
      %v477 = vunpack.c.l.b16 %v213
      %v478 = vunpack.c.l.b16 %v214
      %v479 = vunpack.c.l.b16 %v215
      %v480 = vunpack.c.l.b16 %v216
      %v481 = vunpack.c.l.b16 %v217
      %v482 = vunpack.c.l.b16 %v218
      %v483 = vunpack.c.l.b16 %v219
      %v484 = vunpack.c.l.b16 %v220
      %v485 = vunpack.c.l.b16 %v221
      %v486 = vunpack.c.l.b16 %v222
      %v487 = vunpack.c.l.b16 %v223
      %v488 = vunpack.c.l.b16 %v224
      %v489 = vunpack.c.l.b16 %v225
      %v490 = vunpack.c.l.b16 %v226
      %v491 = vunpack.c.l.b16 %v227
      %v492 = vunpack.c.l.b16 %v228
      %v493 = vunpack.c.l.b16 %v229
      %v494 = vunpack.c.l.b16 %v230
      %v495 = vunpack.c.l.b16 %v231
      %v496 = vunpack.c.l.b16 %v232
      %v497 = vunpack.c.l.b16 %v233
      %v498 = vunpack.c.l.b16 %v234
      %v499 = vunpack.c.l.b16 %v235
      %v500 = vunpack.c.l.b16 %v236
      %v501 = vunpack.c.l.b16 %v237
      %v502 = vunpack.c.l.b16 %v238
      %v503 = vunpack.c.l.b16 %v239
      %v504 = vunpack.c.l.b16 %v240
      %v505 = vunpack.c.l.b16 %v241
      %v506 = vunpack.c.l.b16 %v242
      %v507 = vunpack.c.l.b16 %v243
      %v508 = vunpack.c.l.b16 %v244
      %v509 = vunpack.c.l.b16 %v245
      %v510 = vunpack.c.l.b16 %v246
      %v511 = vunpack.c.l.b16 %v247
      %v512 = vunpack.c.l.b16 %v248
      %v513 = vunpack.c.l.b16 %v249
      %v514 = vunpack.c.l.b16 %v250
      %v515 = vunpack.c.l.b16 %v251
      %v516 = vunpack.c.l.b16 %v252
      %v517 = vunpack.c.l.b16 %v253
      %v518 = vunpack.c.l.b16 %v254
      %v519 = vunpack.c.l.b16 %v255
      %v520 = vunpack.c.l.b16 %v256
      %v521 = vunpack.c.l.b16 %v257
      %v522 = vunpack.c.l.b16 %v258
      %v523 = vunpack.c.l.b16 %v259
      %v524 = vunpack.c.l.b16 %v260
      %v525 = vunpack.c.l.b16 %v261
      %v526 = vunpack.c.l.b16 %v262
      %v527 = vunpack.c.l.b16 %v263
      %v528 = vunpack.c.l.b16 %v264
      %v529 = vunpack.c.l.b16 %v265
      %v530 = vunpack.c.l.b16 %v266
      %v531 = vunpack.c.l.b16 %v267
      %v532 = vunpack.c.l.b16 %v268
      %v533 = vunpack.c.l.b16 %v269
      %v534 = vunpack.c.l.b16 %v270
      %v535 = vunpack.c.l.b16 %v271
      %v536 = vunpack.c.l.b16 %v272
      %v537 = vunpack.c.l.b16 %v273
      %v538 = vunpack.c.l.b16 %v274
      %v539 = vunpack.c.l.b16 %v275
      %v540 = vunpack.c.l.b16 %v276
      %v541 = vunpack.c.l.b16 %v277
      %v542 = vunpack.c.l.b16 %v278
      %v543 = vunpack.c.l.b16 %v279
      %v544 = vunpack.c.l.b16 %v280
      %v545 = vunpack.c.l.b16 %v281
      %v546 = vunpack.c.l.b16 %v282
      %v547 = vunpack.c.l.b16 %v283
      %v548 = vunpack.c.l.b16 %v284
      %v549 = vunpack.c.l.b16 %v285
      %v550 = vunpack.c.l.b16 %v286
      %v551 = vunpack.c.l.b16 %v287
      %v552 = vunpack.c.l.b16 %v288
      %v553 = vunpack.c.l.b16 %v289
      %v554 = vunpack.c.l.b16 %v290
      %v555 = vunpack.c.l.b16 %v291
      %v556 = vunpack.c.l.b16 %v292
      %v557 = vunpack.c.l.b16 %v293
      %v558 = vunpack.c.l.b16 %v294
      %v559 = vunpack.c.l.b16 %v295
      %v560 = vunpack.c.l.b16 %v296
      %v561 = vunpack.c.l.b16 %v297
      %v562 = vunpack.c.l.b16 %v298
      %v563 = vunpack.c.l.b16 %v299
      %v564 = vunpack.c.l.b16 %v300
      %v565 = vunpack.c.l.b16 %v301
      %v566 = vunpack.c.l.b16 %v302
      %v567 = vpack.c.b16 %v440, %v439
      %v568 = vpack.c.b16 %v442, %v441
      %v569 = vpack.c.b16 %v444, %v443
      %v570 = vpack.c.b16 %v446, %v445
      %v571 = vpack.c.b16 %v448, %v447
      %v572 = vpack.c.b16 %v450, %v449
      %v573 = vpack.c.b16 %v452, %v451
      %v574 = vpack.c.b16 %v454, %v453
      %v575 = vpack.c.b16 %v456, %v455
      %v576 = vpack.c.b16 %v458, %v457
      %v577 = vpack.c.b16 %v460, %v459
      %v578 = vpack.c.b16 %v462, %v461
      %v579 = vpack.c.b16 %v464, %v463
      %v580 = vpack.c.b16 %v466, %v465
      %v581 = vpack.c.b16 %v468, %v467
      %v582 = vpack.c.b16 %v470, %v469
      %v583 = vpack.c.b16 %v472, %v471
      %v584 = vpack.c.b16 %v474, %v473
      %v585 = vpack.c.b16 %v476, %v475
      %v586 = vpack.c.b16 %v478, %v477
      %v587 = vpack.c.b16 %v480, %v479
      %v588 = vpack.c.b16 %v482, %v481
      %v589 = vpack.c.b16 %v484, %v483
      %v590 = vpack.c.b16 %v486, %v485
      %v591 = vpack.c.b16 %v488, %v487
      %v592 = vpack.c.b16 %v490, %v489
      %v593 = vpack.c.b16 %v492, %v491
      %v594 = vpack.c.b16 %v494, %v493
      %v595 = vpack.c.b16 %v496, %v495
      %v596 = vpack.c.b16 %v498, %v497
      %v597 = vpack.c.b16 %v500, %v499
      %v598 = vpack.c.b16 %v502, %v501
      %v599 = vpack.c.b16 %v504, %v503
      %v600 = vpack.c.b16 %v506, %v505
      %v601 = vpack.c.b16 %v508, %v507
      %v602 = vpack.c.b16 %v510, %v509
      %v603 = vpack.c.b16 %v512, %v511
      %v604 = vpack.c.b16 %v514, %v513
      %v605 = vpack.c.b16 %v516, %v515
      %v606 = vpack.c.b16 %v518, %v517
      %v607 = vpack.c.b16 %v520, %v519
      %v608 = vpack.c.b16 %v522, %v521
      %v609 = vpack.c.b16 %v524, %v523
      %v610 = vpack.c.b16 %v526, %v525
      %v611 = vpack.c.b16 %v528, %v527
      %v612 = vpack.c.b16 %v530, %v529
      %v613 = vpack.c.b16 %v532, %v531
      %v614 = vpack.c.b16 %v534, %v533
      %v615 = vpack.c.b16 %v536, %v535
      %v616 = vpack.c.b16 %v538, %v537
      %v617 = vpack.c.b16 %v540, %v539
      %v618 = vpack.c.b16 %v542, %v541
      %v619 = vpack.c.b16 %v544, %v543
      %v620 = vpack.c.b16 %v546, %v545
      %v621 = vpack.c.b16 %v548, %v547
      %v622 = vpack.c.b16 %v550, %v549
      %v623 = vpack.c.b16 %v552, %v551
      %v624 = vpack.c.b16 %v554, %v553
      %v625 = vpack.c.b16 %v556, %v555
      %v626 = vpack.c.b16 %v558, %v557
      %v627 = vpack.c.b16 %v560, %v559
      %v628 = vpack.c.b16 %v562, %v561
      %v629 = vpack.c.b16 %v564, %v563
      %v630 = vpack.c.b16 %v566, %v565
      %v635 = vunpack.c.l.b16 %v303
      %v636 = vunpack.c.l.b16 %v304
      %v637 = vunpack.c.l.b16 %v305
      %v638 = vunpack.c.l.b16 %v306
      %v639 = vpack.c.b16 %v636, %v635
      %v640 = vpack.c.b16 %v638, %v637
      %vm642 = vcmask 220160
      %v644 = vsel %vm642, %v567, 0
      %v647 = vsel %vm642, %v568, 0
      %v650 = vsel %vm642, %v569, 0
      %v653 = vsel %vm642, %v570, 0
      %v656 = vsel %vm642, %v571, 0
      %v659 = vsel %vm642, %v572, 0
      %v662 = vsel %vm642, %v573, 0
      %v665 = vsel %vm642, %v574, 0
      %v668 = vsel %vm642, %v575, 0
      %v671 = vsel %vm642, %v576, 0
      %v674 = vsel %vm642, %v577, 0
      %v677 = vsel %vm642, %v578, 0
      %v680 = vsel %vm642, %v579, 0
      %v683 = vsel %vm642, %v580, 0
      %v686 = vsel %vm642, %v581, 0
      %v689 = vsel %vm642, %v582, 0
      %v692 = vsel %vm642, %v583, 0
      %v695 = vsel %vm642, %v584, 0
      %v698 = vsel %vm642, %v585, 0
      %v701 = vsel %vm642, %v586, 0
      %v704 = vsel %vm642, %v587, 0
      %v707 = vsel %vm642, %v588, 0
      %v710 = vsel %vm642, %v589, 0
      %v713 = vsel %vm642, %v590, 0
      %v716 = vsel %vm642, %v591, 0
      %v719 = vsel %vm642, %v592, 0
      %v722 = vsel %vm642, %v593, 0
      %v725 = vsel %vm642, %v594, 0
      %v728 = vsel %vm642, %v595, 0
      %v731 = vsel %vm642, %v596, 0
      %v734 = vsel %vm642, %v597, 0
      %v737 = vsel %vm642, %v598, 0
      %v740 = vsel %vm642, %v599, 0
      %v743 = vsel %vm642, %v600, 0
      %v746 = vsel %vm642, %v601, 0
      %v749 = vsel %vm642, %v602, 0
      %v752 = vsel %vm642, %v603, 0
      %v755 = vsel %vm642, %v604, 0
      %v758 = vsel %vm642, %v605, 0
      %v761 = vsel %vm642, %v606, 0
      %v764 = vsel %vm642, %v607, 0
      %v767 = vsel %vm642, %v608, 0
      %v770 = vsel %vm642, %v609, 0
      %v773 = vsel %vm642, %v610, 0
      %v776 = vsel %vm642, %v611, 0
      %v779 = vsel %vm642, %v612, 0
      %v782 = vsel %vm642, %v613, 0
      %v785 = vsel %vm642, %v614, 0
      %v788 = vsel %vm642, %v615, 0
      %v791 = vsel %vm642, %v616, 0
      %v794 = vsel %vm642, %v617, 0
      %v797 = vsel %vm642, %v618, 0
      %v800 = vsel %vm642, %v619, 0
      %v803 = vsel %vm642, %v620, 0
      %v806 = vsel %vm642, %v621, 0
      %v809 = vsel %vm642, %v622, 0
      %v812 = vsel %vm642, %v623, 0
      %v815 = vsel %vm642, %v624, 0
      %v818 = vsel %vm642, %v625, 0
      %v821 = vsel %vm642, %v626, 0
      %v824 = vsel %vm642, %v627, 0
      %v827 = vsel %vm642, %v628, 0
      %v830 = vsel %vm642, %v629, 0
      %v833 = vsel %vm642, %v630, 0
      %vm835 = vcmask 1044480
      %vm836 = vcmask 1045504
      %v837 = vsel %vm835, 4294967295, 65535
      %v838 = vsel %vm836, %v837, 0
      %v840 = vand.u32 %v640, %v838
      %842 = vmatpush.bf16.msra.mxu0 0
      %843 = vmatpush.bf16.msra.mxu0 0
      %844 = vmatpush.bf16.msra.mxu0 0
      %845 = vmatpush.bf16.msra.mxu0 0
      %846 = vmatpush.bf16.msra.mxu0 0
      %847 = vmatpush.bf16.msra.mxu0 0
      %848 = vmatpush.bf16.msra.mxu0 %v840
      %849 = vmatpush.bf16.msra.mxu0 %v639
      %850 = vmatmul.bf16.gmra.mxu0 %v644
      %v851 = vpop.f32.mrf.mxu0
      %v852 = vadd.f32 %v309, %v851
      %v853 = vpop.f32.mrf.mxu0
      %v854 = vadd.f32 %v309, %v853
      %855 = vmatmul.bf16.gmra.mxu0 %v647
      %v856 = vpop.f32.mrf.mxu0
      %v857 = vadd.f32 %v309, %v856
      %v858 = vpop.f32.mrf.mxu0
      %v859 = vadd.f32 %v309, %v858
      %860 = vmatmul.bf16.gmra.mxu0 %v650
      %v861 = vpop.f32.mrf.mxu0
      %v862 = vadd.f32 %v309, %v861
      %v863 = vpop.f32.mrf.mxu0
      %v864 = vadd.f32 %v309, %v863
      %865 = vmatmul.bf16.gmra.mxu0 %v653
      %v866 = vpop.f32.mrf.mxu0
      %v867 = vadd.f32 %v309, %v866
      %v868 = vpop.f32.mrf.mxu0
      %v869 = vadd.f32 %v309, %v868
      %870 = vmatmul.bf16.gmra.mxu0 %v656
      %v871 = vpop.f32.mrf.mxu0
      %v872 = vadd.f32 %v309, %v871
      %v873 = vpop.f32.mrf.mxu0
      %v874 = vadd.f32 %v309, %v873
      %875 = vmatmul.bf16.gmra.mxu0 %v659
      %v876 = vpop.f32.mrf.mxu0
      %v877 = vadd.f32 %v309, %v876
      %v878 = vpop.f32.mrf.mxu0
      %v879 = vadd.f32 %v309, %v878
      %880 = vmatmul.bf16.gmra.mxu0 %v662
      %v881 = vpop.f32.mrf.mxu0
      %v882 = vadd.f32 %v309, %v881
      %v883 = vpop.f32.mrf.mxu0
      %v884 = vadd.f32 %v309, %v883
      %885 = vmatmul.bf16.gmra.mxu0 %v665
      %v886 = vpop.f32.mrf.mxu0
      %v887 = vadd.f32 %v309, %v886
      %v888 = vpop.f32.mrf.mxu0
      %v889 = vadd.f32 %v309, %v888
      %890 = vmatmul.bf16.gmra.mxu0 %v668
      %v891 = vpop.f32.mrf.mxu0
      %v892 = vadd.f32 %v309, %v891
      %v893 = vpop.f32.mrf.mxu0
      %v894 = vadd.f32 %v309, %v893
      %895 = vmatmul.bf16.gmra.mxu0 %v671
      %v896 = vpop.f32.mrf.mxu0
      %v897 = vadd.f32 %v309, %v896
      %v898 = vpop.f32.mrf.mxu0
      %v899 = vadd.f32 %v309, %v898
      %900 = vmatmul.bf16.gmra.mxu0 %v674
      %v901 = vpop.f32.mrf.mxu0
      %v902 = vadd.f32 %v309, %v901
      %v903 = vpop.f32.mrf.mxu0
      %v904 = vadd.f32 %v309, %v903
      %905 = vmatmul.bf16.gmra.mxu0 %v677
      %v906 = vpop.f32.mrf.mxu0
      %v907 = vadd.f32 %v309, %v906
      %v908 = vpop.f32.mrf.mxu0
      %v909 = vadd.f32 %v309, %v908
      %910 = vmatmul.bf16.gmra.mxu0 %v680
      %v911 = vpop.f32.mrf.mxu0
      %v912 = vadd.f32 %v309, %v911
      %v913 = vpop.f32.mrf.mxu0
      %v914 = vadd.f32 %v309, %v913
      %915 = vmatmul.bf16.gmra.mxu0 %v683
      %v916 = vpop.f32.mrf.mxu0
      %v917 = vadd.f32 %v309, %v916
      %v918 = vpop.f32.mrf.mxu0
      %v919 = vadd.f32 %v309, %v918
      %920 = vmatmul.bf16.gmra.mxu0 %v686
      %v921 = vpop.f32.mrf.mxu0
      %v922 = vadd.f32 %v309, %v921
      %v923 = vpop.f32.mrf.mxu0
      %v924 = vadd.f32 %v309, %v923
      %925 = vmatmul.bf16.gmra.mxu0 %v689
      %v926 = vpop.f32.mrf.mxu0
      %v927 = vadd.f32 %v309, %v926
      %v928 = vpop.f32.mrf.mxu0
      %v929 = vadd.f32 %v309, %v928
      %930 = vmatmul.bf16.gmra.mxu0 %v692
      %v931 = vpop.f32.mrf.mxu0
      %v932 = vadd.f32 %v309, %v931
      %v933 = vpop.f32.mrf.mxu0
      %v934 = vadd.f32 %v309, %v933
      %935 = vmatmul.bf16.gmra.mxu0 %v695
      %v936 = vpop.f32.mrf.mxu0
      %v937 = vadd.f32 %v309, %v936
      %v938 = vpop.f32.mrf.mxu0
      %v939 = vadd.f32 %v309, %v938
      %940 = vmatmul.bf16.gmra.mxu0 %v698
      %v941 = vpop.f32.mrf.mxu0
      %v942 = vadd.f32 %v309, %v941
      %v943 = vpop.f32.mrf.mxu0
      %v944 = vadd.f32 %v309, %v943
      %945 = vmatmul.bf16.gmra.mxu0 %v701
      %v946 = vpop.f32.mrf.mxu0
      %v947 = vadd.f32 %v309, %v946
      %v948 = vpop.f32.mrf.mxu0
      %v949 = vadd.f32 %v309, %v948
      %950 = vmatmul.bf16.gmra.mxu0 %v704
      %v951 = vpop.f32.mrf.mxu0
      %v952 = vadd.f32 %v309, %v951
      %v953 = vpop.f32.mrf.mxu0
      %v954 = vadd.f32 %v309, %v953
      %955 = vmatmul.bf16.gmra.mxu0 %v707
      %v956 = vpop.f32.mrf.mxu0
      %v957 = vadd.f32 %v309, %v956
      %v958 = vpop.f32.mrf.mxu0
      %v959 = vadd.f32 %v309, %v958
      %960 = vmatmul.bf16.gmra.mxu0 %v710
      %v961 = vpop.f32.mrf.mxu0
      %v962 = vadd.f32 %v309, %v961
      %v963 = vpop.f32.mrf.mxu0
      %v964 = vadd.f32 %v309, %v963
      %965 = vmatmul.bf16.gmra.mxu0 %v713
      %v966 = vpop.f32.mrf.mxu0
      %v967 = vadd.f32 %v309, %v966
      %v968 = vpop.f32.mrf.mxu0
      %v969 = vadd.f32 %v309, %v968
      %970 = vmatmul.bf16.gmra.mxu0 %v716
      %v971 = vpop.f32.mrf.mxu0
      %v972 = vadd.f32 %v309, %v971
      %v973 = vpop.f32.mrf.mxu0
      %v974 = vadd.f32 %v309, %v973
      %975 = vmatmul.bf16.gmra.mxu0 %v719
      %v976 = vpop.f32.mrf.mxu0
      %v977 = vadd.f32 %v309, %v976
      %v978 = vpop.f32.mrf.mxu0
      %v979 = vadd.f32 %v309, %v978
      %980 = vmatmul.bf16.gmra.mxu0 %v722
      %v981 = vpop.f32.mrf.mxu0
      %v982 = vadd.f32 %v309, %v981
      %v983 = vpop.f32.mrf.mxu0
      %v984 = vadd.f32 %v309, %v983
      %985 = vmatmul.bf16.gmra.mxu0 %v725
      %v986 = vpop.f32.mrf.mxu0
      %v987 = vadd.f32 %v309, %v986
      %v988 = vpop.f32.mrf.mxu0
      %v989 = vadd.f32 %v309, %v988
      %990 = vmatmul.bf16.gmra.mxu0 %v728
      %v991 = vpop.f32.mrf.mxu0
      %v992 = vadd.f32 %v309, %v991
      %v993 = vpop.f32.mrf.mxu0
      %v994 = vadd.f32 %v309, %v993
      %995 = vmatmul.bf16.gmra.mxu0 %v731
      %v996 = vpop.f32.mrf.mxu0
      %v997 = vadd.f32 %v309, %v996
      %v998 = vpop.f32.mrf.mxu0
      %v999 = vadd.f32 %v309, %v998
      %1000 = vmatmul.bf16.gmra.mxu0 %v734
      %v1001 = vpop.f32.mrf.mxu0
      %v1002 = vadd.f32 %v309, %v1001
      %v1003 = vpop.f32.mrf.mxu0
      %v1004 = vadd.f32 %v309, %v1003
      %1005 = vmatmul.bf16.gmra.mxu0 %v737
      %v1006 = vpop.f32.mrf.mxu0
      %v1007 = vadd.f32 %v309, %v1006
      %v1008 = vpop.f32.mrf.mxu0
      %v1009 = vadd.f32 %v309, %v1008
      %1010 = vmatmul.bf16.gmra.mxu0 %v740
      %v1011 = vpop.f32.mrf.mxu0
      %v1012 = vadd.f32 %v309, %v1011
      %v1013 = vpop.f32.mrf.mxu0
      %v1014 = vadd.f32 %v309, %v1013
      %1015 = vmatmul.bf16.gmra.mxu0 %v743
      %v1016 = vpop.f32.mrf.mxu0
      %v1017 = vadd.f32 %v309, %v1016
      %v1018 = vpop.f32.mrf.mxu0
      %v1019 = vadd.f32 %v309, %v1018
      %1020 = vmatmul.bf16.gmra.mxu0 %v746
      %v1021 = vpop.f32.mrf.mxu0
      %v1022 = vadd.f32 %v309, %v1021
      %v1023 = vpop.f32.mrf.mxu0
      %v1024 = vadd.f32 %v309, %v1023
      %1025 = vmatmul.bf16.gmra.mxu0 %v749
      %v1026 = vpop.f32.mrf.mxu0
      %v1027 = vadd.f32 %v309, %v1026
      %v1028 = vpop.f32.mrf.mxu0
      %v1029 = vadd.f32 %v309, %v1028
      %1030 = vmatmul.bf16.gmra.mxu0 %v752
      %v1031 = vpop.f32.mrf.mxu0
      %v1032 = vadd.f32 %v309, %v1031
      %v1033 = vpop.f32.mrf.mxu0
      %v1034 = vadd.f32 %v309, %v1033
      %1035 = vmatmul.bf16.gmra.mxu0 %v755
      %v1036 = vpop.f32.mrf.mxu0
      %v1037 = vadd.f32 %v309, %v1036
      %v1038 = vpop.f32.mrf.mxu0
      %v1039 = vadd.f32 %v309, %v1038
      %1040 = vmatmul.bf16.gmra.mxu0 %v758
      %v1041 = vpop.f32.mrf.mxu0
      %v1042 = vadd.f32 %v309, %v1041
      %v1043 = vpop.f32.mrf.mxu0
      %v1044 = vadd.f32 %v309, %v1043
      %1045 = vmatmul.bf16.gmra.mxu0 %v761
      %v1046 = vpop.f32.mrf.mxu0
      %v1047 = vadd.f32 %v309, %v1046
      %v1048 = vpop.f32.mrf.mxu0
      %v1049 = vadd.f32 %v309, %v1048
      %1050 = vmatmul.bf16.gmra.mxu0 %v764
      %v1051 = vpop.f32.mrf.mxu0
      %v1052 = vadd.f32 %v309, %v1051
      %v1053 = vpop.f32.mrf.mxu0
      %v1054 = vadd.f32 %v309, %v1053
      %1055 = vmatmul.bf16.gmra.mxu0 %v767
      %v1056 = vpop.f32.mrf.mxu0
      %v1057 = vadd.f32 %v309, %v1056
      %v1058 = vpop.f32.mrf.mxu0
      %v1059 = vadd.f32 %v309, %v1058
      %1060 = vmatmul.bf16.gmra.mxu0 %v770
      %v1061 = vpop.f32.mrf.mxu0
      %v1062 = vadd.f32 %v309, %v1061
      %v1063 = vpop.f32.mrf.mxu0
      %v1064 = vadd.f32 %v309, %v1063
      %1065 = vmatmul.bf16.gmra.mxu0 %v773
      %v1066 = vpop.f32.mrf.mxu0
      %v1067 = vadd.f32 %v309, %v1066
      %v1068 = vpop.f32.mrf.mxu0
      %v1069 = vadd.f32 %v309, %v1068
      %1070 = vmatmul.bf16.gmra.mxu0 %v776
      %v1071 = vpop.f32.mrf.mxu0
      %v1072 = vadd.f32 %v309, %v1071
      %v1073 = vpop.f32.mrf.mxu0
      %v1074 = vadd.f32 %v309, %v1073
      %1075 = vmatmul.bf16.gmra.mxu0 %v779
      %v1076 = vpop.f32.mrf.mxu0
      %v1077 = vadd.f32 %v309, %v1076
      %v1078 = vpop.f32.mrf.mxu0
      %v1079 = vadd.f32 %v309, %v1078
      %1080 = vmatmul.bf16.gmra.mxu0 %v782
      %v1081 = vpop.f32.mrf.mxu0
      %v1082 = vadd.f32 %v309, %v1081
      %v1083 = vpop.f32.mrf.mxu0
      %v1084 = vadd.f32 %v309, %v1083
      %1085 = vmatmul.bf16.gmra.mxu0 %v785
      %v1086 = vpop.f32.mrf.mxu0
      %v1087 = vadd.f32 %v309, %v1086
      %v1088 = vpop.f32.mrf.mxu0
      %v1089 = vadd.f32 %v309, %v1088
      %1090 = vmatmul.bf16.gmra.mxu0 %v788
      %v1091 = vpop.f32.mrf.mxu0
      %v1092 = vadd.f32 %v309, %v1091
      %v1093 = vpop.f32.mrf.mxu0
      %v1094 = vadd.f32 %v309, %v1093
      %1095 = vmatmul.bf16.gmra.mxu0 %v791
      %v1096 = vpop.f32.mrf.mxu0
      %v1097 = vadd.f32 %v309, %v1096
      %v1098 = vpop.f32.mrf.mxu0
      %v1099 = vadd.f32 %v309, %v1098
      %1100 = vmatmul.bf16.gmra.mxu0 %v794
      %v1101 = vpop.f32.mrf.mxu0
      %v1102 = vadd.f32 %v309, %v1101
      %v1103 = vpop.f32.mrf.mxu0
      %v1104 = vadd.f32 %v309, %v1103
      %1105 = vmatmul.bf16.gmra.mxu0 %v797
      %v1106 = vpop.f32.mrf.mxu0
      %v1107 = vadd.f32 %v309, %v1106
      %v1108 = vpop.f32.mrf.mxu0
      %v1109 = vadd.f32 %v309, %v1108
      %1110 = vmatmul.bf16.gmra.mxu0 %v800
      %v1111 = vpop.f32.mrf.mxu0
      %v1112 = vadd.f32 %v309, %v1111
      %v1113 = vpop.f32.mrf.mxu0
      %v1114 = vadd.f32 %v309, %v1113
      %1115 = vmatmul.bf16.gmra.mxu0 %v803
      %v1116 = vpop.f32.mrf.mxu0
      %v1117 = vadd.f32 %v309, %v1116
      %v1118 = vpop.f32.mrf.mxu0
      %v1119 = vadd.f32 %v309, %v1118
      %1120 = vmatmul.bf16.gmra.mxu0 %v806
      %v1121 = vpop.f32.mrf.mxu0
      %v1122 = vadd.f32 %v309, %v1121
      %v1123 = vpop.f32.mrf.mxu0
      %v1124 = vadd.f32 %v309, %v1123
      %1125 = vmatmul.bf16.gmra.mxu0 %v809
      %v1126 = vpop.f32.mrf.mxu0
      %v1127 = vadd.f32 %v309, %v1126
      %v1128 = vpop.f32.mrf.mxu0
      %v1129 = vadd.f32 %v309, %v1128
      %1130 = vmatmul.bf16.gmra.mxu0 %v812
      %v1131 = vpop.f32.mrf.mxu0
      %v1132 = vadd.f32 %v309, %v1131
      %v1133 = vpop.f32.mrf.mxu0
      %v1134 = vadd.f32 %v309, %v1133
      %1135 = vmatmul.bf16.gmra.mxu0 %v815
      %v1136 = vpop.f32.mrf.mxu0
      %v1137 = vadd.f32 %v309, %v1136
      %v1138 = vpop.f32.mrf.mxu0
      %v1139 = vadd.f32 %v309, %v1138
      %1140 = vmatmul.bf16.gmra.mxu0 %v818
      %v1141 = vpop.f32.mrf.mxu0
      %v1142 = vadd.f32 %v309, %v1141
      %v1143 = vpop.f32.mrf.mxu0
      %v1144 = vadd.f32 %v309, %v1143
      %1145 = vmatmul.bf16.gmra.mxu0 %v821
      %v1146 = vpop.f32.mrf.mxu0
      %v1147 = vadd.f32 %v309, %v1146
      %v1148 = vpop.f32.mrf.mxu0
      %v1149 = vadd.f32 %v309, %v1148
      %1150 = vmatmul.bf16.gmra.mxu0 %v824
      %v1151 = vpop.f32.mrf.mxu0
      %v1152 = vadd.f32 %v309, %v1151
      %v1153 = vpop.f32.mrf.mxu0
      %v1154 = vadd.f32 %v309, %v1153
      %1155 = vmatmul.bf16.gmra.mxu0 %v827
      %v1156 = vpop.f32.mrf.mxu0
      %v1157 = vadd.f32 %v309, %v1156
      %v1158 = vpop.f32.mrf.mxu0
      %v1159 = vadd.f32 %v309, %v1158
      %1160 = vmatmul.bf16.gmra.mxu0 %v830
      %v1161 = vpop.f32.mrf.mxu0
      %v1162 = vadd.f32 %v309, %v1161
      %v1163 = vpop.f32.mrf.mxu0
      %v1164 = vadd.f32 %v309, %v1163
      %1165 = vmatmul.bf16.gmra.mxu0 %v833
      %v1166 = vpop.f32.mrf.mxu0
      %v1167 = vadd.f32 %v309, %v1166
      %v1168 = vpop.f32.mrf.mxu0
      %v1169 = vadd.f32 %v309, %v1168
      %1170 = vdwg.mxu0
      %v1171 = vmax.f32 %v852, 0.0
      %v1172 = vmax.f32 %v854, 0.0
      %v1173 = vmax.f32 %v857, 0.0
      %v1174 = vmax.f32 %v859, 0.0
      %v1175 = vmax.f32 %v862, 0.0
      %v1176 = vmax.f32 %v864, 0.0
      %v1177 = vmax.f32 %v867, 0.0
      %v1178 = vmax.f32 %v869, 0.0
      %v1179 = vmax.f32 %v872, 0.0
      %v1180 = vmax.f32 %v874, 0.0
      %v1181 = vmax.f32 %v877, 0.0
      %v1182 = vmax.f32 %v879, 0.0
      %v1183 = vmax.f32 %v882, 0.0
      %v1184 = vmax.f32 %v884, 0.0
      %v1185 = vmax.f32 %v887, 0.0
      %v1186 = vmax.f32 %v889, 0.0
      %v1187 = vmax.f32 %v892, 0.0
      %v1188 = vmax.f32 %v894, 0.0
      %v1189 = vmax.f32 %v897, 0.0
      %v1190 = vmax.f32 %v899, 0.0
      %v1191 = vmax.f32 %v902, 0.0
      %v1192 = vmax.f32 %v904, 0.0
      %v1193 = vmax.f32 %v907, 0.0
      %v1194 = vmax.f32 %v909, 0.0
      %v1195 = vmax.f32 %v912, 0.0
      %v1196 = vmax.f32 %v914, 0.0
      %v1197 = vmax.f32 %v917, 0.0
      %v1198 = vmax.f32 %v919, 0.0
      %v1199 = vmax.f32 %v922, 0.0
      %v1200 = vmax.f32 %v924, 0.0
      %v1201 = vmax.f32 %v927, 0.0
      %v1202 = vmax.f32 %v929, 0.0
      %v1203 = vmax.f32 %v932, 0.0
      %v1204 = vmax.f32 %v934, 0.0
      %v1205 = vmax.f32 %v937, 0.0
      %v1206 = vmax.f32 %v939, 0.0
      %v1207 = vmax.f32 %v942, 0.0
      %v1208 = vmax.f32 %v944, 0.0
      %v1209 = vmax.f32 %v947, 0.0
      %v1210 = vmax.f32 %v949, 0.0
      %v1211 = vmax.f32 %v952, 0.0
      %v1212 = vmax.f32 %v954, 0.0
      %v1213 = vmax.f32 %v957, 0.0
      %v1214 = vmax.f32 %v959, 0.0
      %v1215 = vmax.f32 %v962, 0.0
      %v1216 = vmax.f32 %v964, 0.0
      %v1217 = vmax.f32 %v967, 0.0
      %v1218 = vmax.f32 %v969, 0.0
      %v1219 = vmax.f32 %v972, 0.0
      %v1220 = vmax.f32 %v974, 0.0
      %v1221 = vmax.f32 %v977, 0.0
      %v1222 = vmax.f32 %v979, 0.0
      %v1223 = vmax.f32 %v982, 0.0
      %v1224 = vmax.f32 %v984, 0.0
      %v1225 = vmax.f32 %v987, 0.0
      %v1226 = vmax.f32 %v989, 0.0
      %v1227 = vmax.f32 %v992, 0.0
      %v1228 = vmax.f32 %v994, 0.0
      %v1229 = vmax.f32 %v997, 0.0
      %v1230 = vmax.f32 %v999, 0.0
      %v1231 = vmax.f32 %v1002, 0.0
      %v1232 = vmax.f32 %v1004, 0.0
      %v1233 = vmax.f32 %v1007, 0.0
      %v1234 = vmax.f32 %v1009, 0.0
      %v1235 = vmax.f32 %v1012, 0.0
      %v1236 = vmax.f32 %v1014, 0.0
      %v1237 = vmax.f32 %v1017, 0.0
      %v1238 = vmax.f32 %v1019, 0.0
      %v1239 = vmax.f32 %v1022, 0.0
      %v1240 = vmax.f32 %v1024, 0.0
      %v1241 = vmax.f32 %v1027, 0.0
      %v1242 = vmax.f32 %v1029, 0.0
      %v1243 = vmax.f32 %v1032, 0.0
      %v1244 = vmax.f32 %v1034, 0.0
      %v1245 = vmax.f32 %v1037, 0.0
      %v1246 = vmax.f32 %v1039, 0.0
      %v1247 = vmax.f32 %v1042, 0.0
      %v1248 = vmax.f32 %v1044, 0.0
      %v1249 = vmax.f32 %v1047, 0.0
      %v1250 = vmax.f32 %v1049, 0.0
      %v1251 = vmax.f32 %v1052, 0.0
      %v1252 = vmax.f32 %v1054, 0.0
      %v1253 = vmax.f32 %v1057, 0.0
      %v1254 = vmax.f32 %v1059, 0.0
      %v1255 = vmax.f32 %v1062, 0.0
      %v1256 = vmax.f32 %v1064, 0.0
      %v1257 = vmax.f32 %v1067, 0.0
      %v1258 = vmax.f32 %v1069, 0.0
      %v1259 = vmax.f32 %v1072, 0.0
      %v1260 = vmax.f32 %v1074, 0.0
      %v1261 = vmax.f32 %v1077, 0.0
      %v1262 = vmax.f32 %v1079, 0.0
      %v1263 = vmax.f32 %v1082, 0.0
      %v1264 = vmax.f32 %v1084, 0.0
      %v1265 = vmax.f32 %v1087, 0.0
      %v1266 = vmax.f32 %v1089, 0.0
      %v1267 = vmax.f32 %v1092, 0.0
      %v1268 = vmax.f32 %v1094, 0.0
      %v1269 = vmax.f32 %v1097, 0.0
      %v1270 = vmax.f32 %v1099, 0.0
      %v1271 = vmax.f32 %v1102, 0.0
      %v1272 = vmax.f32 %v1104, 0.0
      %v1273 = vmax.f32 %v1107, 0.0
      %v1274 = vmax.f32 %v1109, 0.0
      %v1275 = vmax.f32 %v1112, 0.0
      %v1276 = vmax.f32 %v1114, 0.0
      %v1277 = vmax.f32 %v1117, 0.0
      %v1278 = vmax.f32 %v1119, 0.0
      %v1279 = vmax.f32 %v1122, 0.0
      %v1280 = vmax.f32 %v1124, 0.0
      %v1281 = vmax.f32 %v1127, 0.0
      %v1282 = vmax.f32 %v1129, 0.0
      %v1283 = vmax.f32 %v1132, 0.0
      %v1284 = vmax.f32 %v1134, 0.0
      %v1285 = vmax.f32 %v1137, 0.0
      %v1286 = vmax.f32 %v1139, 0.0
      %v1287 = vmax.f32 %v1142, 0.0
      %v1288 = vmax.f32 %v1144, 0.0
      %v1289 = vmax.f32 %v1147, 0.0
      %v1290 = vmax.f32 %v1149, 0.0
      %v1291 = vmax.f32 %v1152, 0.0
      %v1292 = vmax.f32 %v1154, 0.0
      %v1293 = vmax.f32 %v1157, 0.0
      %v1294 = vmax.f32 %v1159, 0.0
      %v1295 = vmax.f32 %v1162, 0.0
      %v1296 = vmax.f32 %v1164, 0.0
      %v1297 = vmax.f32 %v1167, 0.0
      %v1298 = vmax.f32 %v1169, 0.0
      %v1299 = vpack.c.bf16 %v1171, %v1171
      %v1300 = vpack.c.bf16 %v1172, %v1172
      %v1301 = vpack.c.bf16 %v1173, %v1173
      %v1302 = vpack.c.bf16 %v1174, %v1174
      %v1303 = vpack.c.bf16 %v1175, %v1175
      %v1304 = vpack.c.bf16 %v1176, %v1176
      %v1305 = vpack.c.bf16 %v1177, %v1177
      %v1306 = vpack.c.bf16 %v1178, %v1178
      %v1307 = vpack.c.bf16 %v1179, %v1179
      %v1308 = vpack.c.bf16 %v1180, %v1180
      %v1309 = vpack.c.bf16 %v1181, %v1181
      %v1310 = vpack.c.bf16 %v1182, %v1182
      %v1311 = vpack.c.bf16 %v1183, %v1183
      %v1312 = vpack.c.bf16 %v1184, %v1184
      %v1313 = vpack.c.bf16 %v1185, %v1185
      %v1314 = vpack.c.bf16 %v1186, %v1186
      %v1315 = vpack.c.bf16 %v1187, %v1187
      %v1316 = vpack.c.bf16 %v1188, %v1188
      %v1317 = vpack.c.bf16 %v1189, %v1189
      %v1318 = vpack.c.bf16 %v1190, %v1190
      %v1319 = vpack.c.bf16 %v1191, %v1191
      %v1320 = vpack.c.bf16 %v1192, %v1192
      %v1321 = vpack.c.bf16 %v1193, %v1193
      %v1322 = vpack.c.bf16 %v1194, %v1194
      %v1323 = vpack.c.bf16 %v1195, %v1195
      %v1324 = vpack.c.bf16 %v1196, %v1196
      %v1325 = vpack.c.bf16 %v1197, %v1197
      %v1326 = vpack.c.bf16 %v1198, %v1198
      %v1327 = vpack.c.bf16 %v1199, %v1199
      %v1328 = vpack.c.bf16 %v1200, %v1200
      %v1329 = vpack.c.bf16 %v1201, %v1201
      %v1330 = vpack.c.bf16 %v1202, %v1202
      %v1331 = vpack.c.bf16 %v1203, %v1203
      %v1332 = vpack.c.bf16 %v1204, %v1204
      %v1333 = vpack.c.bf16 %v1205, %v1205
      %v1334 = vpack.c.bf16 %v1206, %v1206
      %v1335 = vpack.c.bf16 %v1207, %v1207
      %v1336 = vpack.c.bf16 %v1208, %v1208
      %v1337 = vpack.c.bf16 %v1209, %v1209
      %v1338 = vpack.c.bf16 %v1210, %v1210
      %v1339 = vpack.c.bf16 %v1211, %v1211
      %v1340 = vpack.c.bf16 %v1212, %v1212
      %v1341 = vpack.c.bf16 %v1213, %v1213
      %v1342 = vpack.c.bf16 %v1214, %v1214
      %v1343 = vpack.c.bf16 %v1215, %v1215
      %v1344 = vpack.c.bf16 %v1216, %v1216
      %v1345 = vpack.c.bf16 %v1217, %v1217
      %v1346 = vpack.c.bf16 %v1218, %v1218
      %v1347 = vpack.c.bf16 %v1219, %v1219
      %v1348 = vpack.c.bf16 %v1220, %v1220
      %v1349 = vpack.c.bf16 %v1221, %v1221
      %v1350 = vpack.c.bf16 %v1222, %v1222
      %v1351 = vpack.c.bf16 %v1223, %v1223
      %v1352 = vpack.c.bf16 %v1224, %v1224
      %v1353 = vpack.c.bf16 %v1225, %v1225
      %v1354 = vpack.c.bf16 %v1226, %v1226
      %v1355 = vpack.c.bf16 %v1227, %v1227
      %v1356 = vpack.c.bf16 %v1228, %v1228
      %v1357 = vpack.c.bf16 %v1229, %v1229
      %v1358 = vpack.c.bf16 %v1230, %v1230
      %v1359 = vpack.c.bf16 %v1231, %v1231
      %v1360 = vpack.c.bf16 %v1232, %v1232
      %v1361 = vpack.c.bf16 %v1233, %v1233
      %v1362 = vpack.c.bf16 %v1234, %v1234
      %v1363 = vpack.c.bf16 %v1235, %v1235
      %v1364 = vpack.c.bf16 %v1236, %v1236
      %v1365 = vpack.c.bf16 %v1237, %v1237
      %v1366 = vpack.c.bf16 %v1238, %v1238
      %v1367 = vpack.c.bf16 %v1239, %v1239
      %v1368 = vpack.c.bf16 %v1240, %v1240
      %v1369 = vpack.c.bf16 %v1241, %v1241
      %v1370 = vpack.c.bf16 %v1242, %v1242
      %v1371 = vpack.c.bf16 %v1243, %v1243
      %v1372 = vpack.c.bf16 %v1244, %v1244
      %v1373 = vpack.c.bf16 %v1245, %v1245
      %v1374 = vpack.c.bf16 %v1246, %v1246
      %v1375 = vpack.c.bf16 %v1247, %v1247
      %v1376 = vpack.c.bf16 %v1248, %v1248
      %v1377 = vpack.c.bf16 %v1249, %v1249
      %v1378 = vpack.c.bf16 %v1250, %v1250
      %v1379 = vpack.c.bf16 %v1251, %v1251
      %v1380 = vpack.c.bf16 %v1252, %v1252
      %v1381 = vpack.c.bf16 %v1253, %v1253
      %v1382 = vpack.c.bf16 %v1254, %v1254
      %v1383 = vpack.c.bf16 %v1255, %v1255
      %v1384 = vpack.c.bf16 %v1256, %v1256
      %v1385 = vpack.c.bf16 %v1257, %v1257
      %v1386 = vpack.c.bf16 %v1258, %v1258
      %v1387 = vpack.c.bf16 %v1259, %v1259
      %v1388 = vpack.c.bf16 %v1260, %v1260
      %v1389 = vpack.c.bf16 %v1261, %v1261
      %v1390 = vpack.c.bf16 %v1262, %v1262
      %v1391 = vpack.c.bf16 %v1263, %v1263
      %v1392 = vpack.c.bf16 %v1264, %v1264
      %v1393 = vpack.c.bf16 %v1265, %v1265
      %v1394 = vpack.c.bf16 %v1266, %v1266
      %v1395 = vpack.c.bf16 %v1267, %v1267
      %v1396 = vpack.c.bf16 %v1268, %v1268
      %v1397 = vpack.c.bf16 %v1269, %v1269
      %v1398 = vpack.c.bf16 %v1270, %v1270
      %v1399 = vpack.c.bf16 %v1271, %v1271
      %v1400 = vpack.c.bf16 %v1272, %v1272
      %v1401 = vpack.c.bf16 %v1273, %v1273
      %v1402 = vpack.c.bf16 %v1274, %v1274
      %v1403 = vpack.c.bf16 %v1275, %v1275
      %v1404 = vpack.c.bf16 %v1276, %v1276
      %v1405 = vpack.c.bf16 %v1277, %v1277
      %v1406 = vpack.c.bf16 %v1278, %v1278
      %v1407 = vpack.c.bf16 %v1279, %v1279
      %v1408 = vpack.c.bf16 %v1280, %v1280
      %v1409 = vpack.c.bf16 %v1281, %v1281
      %v1410 = vpack.c.bf16 %v1282, %v1282
      %v1411 = vpack.c.bf16 %v1283, %v1283
      %v1412 = vpack.c.bf16 %v1284, %v1284
      %v1413 = vpack.c.bf16 %v1285, %v1285
      %v1414 = vpack.c.bf16 %v1286, %v1286
      %v1415 = vpack.c.bf16 %v1287, %v1287
      %v1416 = vpack.c.bf16 %v1288, %v1288
      %v1417 = vpack.c.bf16 %v1289, %v1289
      %v1418 = vpack.c.bf16 %v1290, %v1290
      %v1419 = vpack.c.bf16 %v1291, %v1291
      %v1420 = vpack.c.bf16 %v1292, %v1292
      %v1421 = vpack.c.bf16 %v1293, %v1293
      %v1422 = vpack.c.bf16 %v1294, %v1294
      %v1423 = vpack.c.bf16 %v1295, %v1295
      %v1424 = vpack.c.bf16 %v1296, %v1296
      %v1425 = vpack.c.bf16 %v1297, %v1297
      %v1426 = vpack.c.bf16 %v1298, %v1298
      %vm1427 = vcmask 60416
      %1428 = vst.msk [vmem:[%s172] sm:$0xf] %vm1427, %v1299
      %1429 = vst.msk [vmem:[%s172 + $0x4] sm:$0xf] %vm1427, %v1300
      %1430 = vst.msk [vmem:[%s172 + $0x8] sm:$0xf] %vm1427, %v1301
      %1431 = vst.msk [vmem:[%s172 + $0xc] sm:$0xf] %vm1427, %v1302
      %1432 = vst.msk [vmem:[%s172 + $0x10] sm:$0xf] %vm1427, %v1303
      %1433 = vst.msk [vmem:[%s172 + $0x14] sm:$0xf] %vm1427, %v1304
      %1434 = vst.msk [vmem:[%s172 + $0x18] sm:$0xf] %vm1427, %v1305
      %1435 = vst.msk [vmem:[%s172 + $0x1c] sm:$0xf] %vm1427, %v1306
      %1436 = vst.msk [vmem:[%s172 + $0x20] sm:$0xf] %vm1427, %v1307
      %1437 = vst.msk [vmem:[%s172 + $0x24] sm:$0xf] %vm1427, %v1308
      %1438 = vst.msk [vmem:[%s172 + $0x28] sm:$0xf] %vm1427, %v1309
      %1439 = vst.msk [vmem:[%s172 + $0x2c] sm:$0xf] %vm1427, %v1310
      %1440 = vst.msk [vmem:[%s172 + $0x30] sm:$0xf] %vm1427, %v1311
      %1441 = vst.msk [vmem:[%s172 + $0x34] sm:$0xf] %vm1427, %v1312
      %1442 = vst.msk [vmem:[%s172 + $0x38] sm:$0xf] %vm1427, %v1313
      %1443 = vst.msk [vmem:[%s172 + $0x3c] sm:$0xf] %vm1427, %v1314
      %1444 = vst.msk [vmem:[%s172 + $0x40] sm:$0xf] %vm1427, %v1315
      %1445 = vst.msk [vmem:[%s172 + $0x44] sm:$0xf] %vm1427, %v1316
      %1446 = vst.msk [vmem:[%s172 + $0x48] sm:$0xf] %vm1427, %v1317
      %1447 = vst.msk [vmem:[%s172 + $0x4c] sm:$0xf] %vm1427, %v1318
      %1448 = vst.msk [vmem:[%s172 + $0x50] sm:$0xf] %vm1427, %v1319
      %1449 = vst.msk [vmem:[%s172 + $0x54] sm:$0xf] %vm1427, %v1320
      %1450 = vst.msk [vmem:[%s172 + $0x58] sm:$0xf] %vm1427, %v1321
      %1451 = vst.msk [vmem:[%s172 + $0x5c] sm:$0xf] %vm1427, %v1322
      %1452 = vst.msk [vmem:[%s172 + $0x60] sm:$0xf] %vm1427, %v1323
      %1453 = vst.msk [vmem:[%s172 + $0x64] sm:$0xf] %vm1427, %v1324
      %1454 = vst.msk [vmem:[%s172 + $0x68] sm:$0xf] %vm1427, %v1325
      %1455 = vst.msk [vmem:[%s172 + $0x6c] sm:$0xf] %vm1427, %v1326
      %1456 = vst.msk [vmem:[%s172 + $0x70] sm:$0xf] %vm1427, %v1327
      %1457 = vst.msk [vmem:[%s172 + $0x74] sm:$0xf] %vm1427, %v1328
      %1458 = vst.msk [vmem:[%s172 + $0x78] sm:$0xf] %vm1427, %v1329
      %1459 = vst.msk [vmem:[%s172 + $0x7c] sm:$0xf] %vm1427, %v1330
      %1460 = vst.msk [vmem:[%s172 + $0x80] sm:$0xf] %vm1427, %v1331
      %1461 = vst.msk [vmem:[%s172 + $0x84] sm:$0xf] %vm1427, %v1332
      %1462 = vst.msk [vmem:[%s172 + $0x88] sm:$0xf] %vm1427, %v1333
      %1463 = vst.msk [vmem:[%s172 + $0x8c] sm:$0xf] %vm1427, %v1334
      %1464 = vst.msk [vmem:[%s172 + $0x90] sm:$0xf] %vm1427, %v1335
      %1465 = vst.msk [vmem:[%s172 + $0x94] sm:$0xf] %vm1427, %v1336
      %1466 = vst.msk [vmem:[%s172 + $0x98] sm:$0xf] %vm1427, %v1337
      %1467 = vst.msk [vmem:[%s172 + $0x9c] sm:$0xf] %vm1427, %v1338
      %1468 = vst.msk [vmem:[%s172 + $0xa0] sm:$0xf] %vm1427, %v1339
      %1469 = vst.msk [vmem:[%s172 + $0xa4] sm:$0xf] %vm1427, %v1340
      %1470 = vst.msk [vmem:[%s172 + $0xa8] sm:$0xf] %vm1427, %v1341
      %1471 = vst.msk [vmem:[%s172 + $0xac] sm:$0xf] %vm1427, %v1342
      %1472 = vst.msk [vmem:[%s172 + $0xb0] sm:$0xf] %vm1427, %v1343
      %1473 = vst.msk [vmem:[%s172 + $0xb4] sm:$0xf] %vm1427, %v1344
      %1474 = vst.msk [vmem:[%s172 + $0xb8] sm:$0xf] %vm1427, %v1345
      %1475 = vst.msk [vmem:[%s172 + $0xbc] sm:$0xf] %vm1427, %v1346
      %1476 = vst.msk [vmem:[%s172 + $0xc0] sm:$0xf] %vm1427, %v1347
      %1477 = vst.msk [vmem:[%s172 + $0xc4] sm:$0xf] %vm1427, %v1348
      %1478 = vst.msk [vmem:[%s172 + $0xc8] sm:$0xf] %vm1427, %v1349
      %1479 = vst.msk [vmem:[%s172 + $0xcc] sm:$0xf] %vm1427, %v1350
      %1480 = vst.msk [vmem:[%s172 + $0xd0] sm:$0xf] %vm1427, %v1351
      %1481 = vst.msk [vmem:[%s172 + $0xd4] sm:$0xf] %vm1427, %v1352
      %1482 = vst.msk [vmem:[%s172 + $0xd8] sm:$0xf] %vm1427, %v1353
      %1483 = vst.msk [vmem:[%s172 + $0xdc] sm:$0xf] %vm1427, %v1354
      %1484 = vst.msk [vmem:[%s172 + $0xe0] sm:$0xf] %vm1427, %v1355
      %1485 = vst.msk [vmem:[%s172 + $0xe4] sm:$0xf] %vm1427, %v1356
      %1486 = vst.msk [vmem:[%s172 + $0xe8] sm:$0xf] %vm1427, %v1357
      %1487 = vst.msk [vmem:[%s172 + $0xec] sm:$0xf] %vm1427, %v1358
      %1488 = vst.msk [vmem:[%s172 + $0xf0] sm:$0xf] %vm1427, %v1359
      %1489 = vst.msk [vmem:[%s172 + $0xf4] sm:$0xf] %vm1427, %v1360
      %1490 = vst.msk [vmem:[%s172 + $0xf8] sm:$0xf] %vm1427, %v1361
      %1491 = vst.msk [vmem:[%s172 + $0xfc] sm:$0xf] %vm1427, %v1362
      %1492 = vst.msk [vmem:[%s172 + $0x100] sm:$0xf] %vm1427, %v1363
      %1493 = vst.msk [vmem:[%s172 + $0x104] sm:$0xf] %vm1427, %v1364
      %1494 = vst.msk [vmem:[%s172 + $0x108] sm:$0xf] %vm1427, %v1365
      %1495 = vst.msk [vmem:[%s172 + $0x10c] sm:$0xf] %vm1427, %v1366
      %1496 = vst.msk [vmem:[%s172 + $0x110] sm:$0xf] %vm1427, %v1367
      %1497 = vst.msk [vmem:[%s172 + $0x114] sm:$0xf] %vm1427, %v1368
      %1498 = vst.msk [vmem:[%s172 + $0x118] sm:$0xf] %vm1427, %v1369
      %1499 = vst.msk [vmem:[%s172 + $0x11c] sm:$0xf] %vm1427, %v1370
      %1500 = vst.msk [vmem:[%s172 + $0x120] sm:$0xf] %vm1427, %v1371
      %1501 = vst.msk [vmem:[%s172 + $0x124] sm:$0xf] %vm1427, %v1372
      %1502 = vst.msk [vmem:[%s172 + $0x128] sm:$0xf] %vm1427, %v1373
      %1503 = vst.msk [vmem:[%s172 + $0x12c] sm:$0xf] %vm1427, %v1374
      %1504 = vst.msk [vmem:[%s172 + $0x130] sm:$0xf] %vm1427, %v1375
      %1505 = vst.msk [vmem:[%s172 + $0x134] sm:$0xf] %vm1427, %v1376
      %1506 = vst.msk [vmem:[%s172 + $0x138] sm:$0xf] %vm1427, %v1377
      %1507 = vst.msk [vmem:[%s172 + $0x13c] sm:$0xf] %vm1427, %v1378
      %1508 = vst.msk [vmem:[%s172 + $0x140] sm:$0xf] %vm1427, %v1379
      %1509 = vst.msk [vmem:[%s172 + $0x144] sm:$0xf] %vm1427, %v1380
      %1510 = vst.msk [vmem:[%s172 + $0x148] sm:$0xf] %vm1427, %v1381
      %1511 = vst.msk [vmem:[%s172 + $0x14c] sm:$0xf] %vm1427, %v1382
      %1512 = vst.msk [vmem:[%s172 + $0x150] sm:$0xf] %vm1427, %v1383
      %1513 = vst.msk [vmem:[%s172 + $0x154] sm:$0xf] %vm1427, %v1384
      %1514 = vst.msk [vmem:[%s172 + $0x158] sm:$0xf] %vm1427, %v1385
      %1515 = vst.msk [vmem:[%s172 + $0x15c] sm:$0xf] %vm1427, %v1386
      %1516 = vst.msk [vmem:[%s172 + $0x160] sm:$0xf] %vm1427, %v1387
      %1517 = vst.msk [vmem:[%s172 + $0x164] sm:$0xf] %vm1427, %v1388
      %1518 = vst.msk [vmem:[%s172 + $0x168] sm:$0xf] %vm1427, %v1389
      %1519 = vst.msk [vmem:[%s172 + $0x16c] sm:$0xf] %vm1427, %v1390
      %1520 = vst.msk [vmem:[%s172 + $0x170] sm:$0xf] %vm1427, %v1391
      %1521 = vst.msk [vmem:[%s172 + $0x174] sm:$0xf] %vm1427, %v1392
      %1522 = vst.msk [vmem:[%s172 + $0x178] sm:$0xf] %vm1427, %v1393
      %1523 = vst.msk [vmem:[%s172 + $0x17c] sm:$0xf] %vm1427, %v1394
      %1524 = vst.msk [vmem:[%s172 + $0x180] sm:$0xf] %vm1427, %v1395
      %1525 = vst.msk [vmem:[%s172 + $0x184] sm:$0xf] %vm1427, %v1396
      %1526 = vst.msk [vmem:[%s172 + $0x188] sm:$0xf] %vm1427, %v1397
      %1527 = vst.msk [vmem:[%s172 + $0x18c] sm:$0xf] %vm1427, %v1398
      %1528 = vst.msk [vmem:[%s172 + $0x190] sm:$0xf] %vm1427, %v1399
      %1529 = vst.msk [vmem:[%s172 + $0x194] sm:$0xf] %vm1427, %v1400
      %1530 = vst.msk [vmem:[%s172 + $0x198] sm:$0xf] %vm1427, %v1401
      %1531 = vst.msk [vmem:[%s172 + $0x19c] sm:$0xf] %vm1427, %v1402
      %1532 = vst.msk [vmem:[%s172 + $0x1a0] sm:$0xf] %vm1427, %v1403
      %1533 = vst.msk [vmem:[%s172 + $0x1a4] sm:$0xf] %vm1427, %v1404
      %1534 = vst.msk [vmem:[%s172 + $0x1a8] sm:$0xf] %vm1427, %v1405
      %1535 = vst.msk [vmem:[%s172 + $0x1ac] sm:$0xf] %vm1427, %v1406
      %1536 = vst.msk [vmem:[%s172 + $0x1b0] sm:$0xf] %vm1427, %v1407
      %1537 = vst.msk [vmem:[%s172 + $0x1b4] sm:$0xf] %vm1427, %v1408
      %1538 = vst.msk [vmem:[%s172 + $0x1b8] sm:$0xf] %vm1427, %v1409
      %1539 = vst.msk [vmem:[%s172 + $0x1bc] sm:$0xf] %vm1427, %v1410
      %1540 = vst.msk [vmem:[%s172 + $0x1c0] sm:$0xf] %vm1427, %v1411
      %1541 = vst.msk [vmem:[%s172 + $0x1c4] sm:$0xf] %vm1427, %v1412
      %1542 = vst.msk [vmem:[%s172 + $0x1c8] sm:$0xf] %vm1427, %v1413
      %1543 = vst.msk [vmem:[%s172 + $0x1cc] sm:$0xf] %vm1427, %v1414
      %1544 = vst.msk [vmem:[%s172 + $0x1d0] sm:$0xf] %vm1427, %v1415
      %1545 = vst.msk [vmem:[%s172 + $0x1d4] sm:$0xf] %vm1427, %v1416
      %1546 = vst.msk [vmem:[%s172 + $0x1d8] sm:$0xf] %vm1427, %v1417
      %1547 = vst.msk [vmem:[%s172 + $0x1dc] sm:$0xf] %vm1427, %v1418
      %1548 = vst.msk [vmem:[%s172 + $0x1e0] sm:$0xf] %vm1427, %v1419
      %1549 = vst.msk [vmem:[%s172 + $0x1e4] sm:$0xf] %vm1427, %v1420
      %1550 = vst.msk [vmem:[%s172 + $0x1e8] sm:$0xf] %vm1427, %v1421
      %1551 = vst.msk [vmem:[%s172 + $0x1ec] sm:$0xf] %vm1427, %v1422
      %1552 = vst.msk [vmem:[%s172 + $0x1f0] sm:$0xf] %vm1427, %v1423
      %1553 = vst.msk [vmem:[%s172 + $0x1f4] sm:$0xf] %vm1427, %v1424
      %1554 = vst.msk [vmem:[%s172 + $0x1f8] sm:$0xf] %vm1427, %v1425
      %1555 = vst.msk [vmem:[%s172 + $0x1fc] sm:$0xf] %vm1427, %v1426
      %s1556 = smul.u32 128, %s14
      %p1557 = scmp.lt.s32.totalorder %s1556, 255
      %s1558 = scalar_select %p1557, %s1556, 255
      %s1559 = smul.addr %s1558, 4
      %s1560 = scalar_lea.vmem %s3, %s1559
      // Predicated region
      $region33: #{tpu_custom_call.1} parent=31 // pred_check
        %p1561 = pneg %p100
      $region34: #{tpu_custom_call.1} parent=31 // pred_check_branch
        %1563 = sbr.rel (%p1561) target = $region36
      $region35: #{tpu_custom_call.1} parent=31 // pred_region
        %s1564 = smul.u32 128, %s14
      $region36: #{tpu_custom_call.1} parent=31 // pred_fallthru
        _
    $region32: #{tpu_custom_call.1} parent=5 // pred_fallthru
      _
    %p1565 = scmp.le.s32.totalorder 2, %s9
    // Predicated region
    $region37: #{tpu_custom_call.1} parent=5 // pred_check
      %p1566 = pneg %p1565
    $region38: #{tpu_custom_call.1} parent=5 // pred_check_branch
      %1568 = sbr.rel (%p1566) target = $region40
    $region39: #{tpu_custom_call.1} parent=5 // pred_region
      %s1569 = ssub.s32 %s9, 2
      // Predicated region
      $region41: #{tpu_custom_call.1} parent=39 // pred_check
        %p1570 = pneg %p106
      $region42: #{tpu_custom_call.1} parent=39 // pred_check_branch
        %1572 = sbr.rel (%p1570) target = $region44
      $region43: #{tpu_custom_call.1} parent=39 // pred_region
        %s1573 = smul.u32 128, %s15
        %p1574 = scmp.lt.s32.totalorder %s1573, 255
        %s1575 = scalar_select %p1574, %s1573, 255
        %s1576 = smul.addr %s1575, 4
        %s1577 = scalar_lea.vmem %s3, %s1576
      $region44: #{tpu_custom_call.1} parent=39 // pred_fallthru
        _
    $region40: #{tpu_custom_call.1} parent=5 // pred_fallthru
      _
  $region6: #{tpu_custom_call.1} parent=0 // loop_footer
    %s13 = sadd.s32 1, %s9
  $region7: #{tpu_custom_call.1} parent=0 // loop_footer_branch
    %8 = sbr.rel target = $region3
  $region8: #{tpu_custom_call.1} parent=0 // loop_exit
    _

</llo_original>
